<compile_context>
chip_gen: v5e
topology: v5e:2x2
jax: 0.10.0
libtpu: 0.0.40
codegen_flags: <defaults>
</compile_context>

<pallas_src>
import math

import jax
import jax.numpy as jnp
from jax.experimental import pallas as pl
from jax.experimental.pallas import tpu as pltpu

# ---- synthetic model config (small but CLIP-shaped) ----
B = 2          # batch
S = 8          # sequence length
D = 32         # hidden size
H = 4          # attention heads
DH = D // H    # head dim
M = 4 * D      # MLP intermediate
L = 2          # number of encoder layers
VOCAB = 64
EPS = 1e-5
NEG = -1e9
LAYER_SKIP = -1  # CLIPConditioner default

RB = 1           # batch elements per row block (grid axis 0, "parallel")
NBLK = RB * S    # rows per row block in the flattened [B*S, D] layout

WEIGHT_NAMES = ("ln1w", "ln1b", "wqkv", "bqkv", "wo", "bo",
                "ln2w", "ln2b", "w1", "b1", "w2", "b2")


def _mxu_dot(a, w):
    """bf16-input, f32-accumulate matmul (mirrored exactly by the reference)."""
    return jnp.dot(a.astype(jnp.bfloat16), w.astype(jnp.bfloat16),
                   preferred_element_type=jnp.float32)


def _layer_norm(v, w, b):
    mu = jnp.mean(v, axis=-1, keepdims=True)
    var = jnp.mean((v - mu) ** 2, axis=-1, keepdims=True)
    return (v - mu) * jax.lax.rsqrt(var + EPS) * w + b


# ---------------------------------------------------------------------------
# Pallas kernel: grid=(row_blocks, layers).  One grid step = one encoder layer
# applied to one row block, with the activation resident in a VMEM scratch.
# ---------------------------------------------------------------------------
def clip_stack_kernel(
    x_hbm, amask_ref,
    ln1w_ref, ln1b_ref, wqkv_ref, bqkv_ref, wo_ref, bo_ref,
    ln2w_ref, ln2b_ref, w1_ref, b1_ref, w2_ref, b2_ref,
    out_ref,
    x_res, dma_sem,
):
    r = pl.program_id(0)          # row (batch) block, "parallel"
    l = pl.program_id(1)          # encoder layer, sequential carry
    n_layers = pl.num_programs(1)

    # One-time (per row block) load of the embeddings into the resident
    # activation scratch.  x is only read at l == 0, so it stays in HBM
    # (memory_space=pl.ANY) instead of occupying a double-buffered window.
    @pl.when(l == 0)
    def _():
        start = pl.multiple_of(r * NBLK, NBLK)
        cp = pltpu.make_async_copy(x_hbm.at[pl.ds(start, NBLK)], x_res, dma_sem)
        cp.start()
        cp.wait()

    x2 = x_res[...]                                    # [NBLK, D] f32 residual

    # ---- pre-LN self-attention, fused QKV projection (one MXU push) ----
    xn = _layer_norm(x2, ln1w_ref[0], ln1b_ref[0])
    qkv = _mxu_dot(xn, wqkv_ref[0]) + bqkv_ref[0]      # [NBLK, 3D] f32

    amask = amask_ref[...]                             # [RB, S, S], layer-invariant
    scale = 1.0 / (DH ** 0.5)

    # Per-head attention.  Heads live in the lane dim of `qkv`; Mosaic has no
    # cheap sublane<->major transpose / multi-batch-dim dot_general, so we keep
    # a static head loop but accumulate each head's out-projection directly
    # (head-major Wo), so no ctx scratch, masked stores or lane concat, and
    # each head's temporaries die inside its own iteration.
    attn = jnp.zeros((NBLK, D), jnp.float32)
    for h in range(H):                                 # static unroll (H small)
        qh = qkv[:, h * DH:(h + 1) * DH].reshape(RB, S, DH)
        kh = qkv[:, D + h * DH:D + (h + 1) * DH].reshape(RB, S, DH)
        vh = qkv[:, 2 * D + h * DH:2 * D + (h + 1) * DH].reshape(RB, S, DH)
        s = jnp.einsum('bqd,bkd->bqk',
                       qh.astype(jnp.bfloat16), kh.astype(jnp.bfloat16),
                       preferred_element_type=jnp.float32) * scale + amask
        s = s - jnp.max(s, axis=-1, keepdims=True)     # softmax kept in f32
        p = jnp.exp(s)
        p = p / jnp.sum(p, axis=-1, keepdims=True)     # exact div (parity with ref)
        ctx = jnp.einsum('bqk,bkd->bqd',
                         p.astype(jnp.bfloat16), vh.astype(jnp.bfloat16),
                         preferred_element_type=jnp.float32)
        attn = attn + _mxu_dot(ctx.reshape(NBLK, DH), wo_ref[0, h])
    h1 = x2 + attn + bo_ref[0]

    # ---- pre-LN MLP with quick_gelu (as in CLIP) ----
    hn = _layer_norm(h1, ln2w_ref[0], ln2b_ref[0])
    m = _mxu_dot(hn, w1_ref[0]) + b1_ref[0]
    m = m * jax.nn.sigmoid(1.702 * m)                  # quick_gelu, f32
    y = h1 + _mxu_dot(m, w2_ref[0]) + b2_ref[0]

    # Carry to the next layer; only the requested layer's output hits HBM.
    x_res[...] = y

    @pl.when(l == n_layers - 1)
    def _():
        out_ref[...] = y


def clip_encoder_stack(x_flat, amask, params, num_layers):
    """Run `num_layers` encoder layers fused in one pallas_call.

    x_flat: [B*S, D] f32 embeddings; amask: [B, S, S] f32 additive mask.
    """
    weights = [params[name] for name in WEIGHT_NAMES]

    def weight_spec(w):
        nd = w.ndim
        # leading axis = layer; whole trailing dims; streamed per layer step.
        return pl.BlockSpec((1,) + w.shape[1:],
                            lambda r, l, _nd=nd: (l,) + (0,) * (_nd - 1))

    # Explicit VMEM budget (review): double-buffered per-layer weights + mask +
    # output block, plus the resident activation scratch, with headroom.  At
    # toy sizes this collapses to a 32 MiB floor (safe on every generation).
    per_layer = sum(math.prod(w.shape[1:]) * w.dtype.itemsize for w in weights)
    est = 2 * (per_layer + RB * S * S * 4 + NBLK * D * 4) + NBLK * D * 4
    vmem_limit = int(min(56 * 2**20, max(32 * 2**20, 2 * est)))

    return pl.pallas_call(
        clip_stack_kernel,
        out_shape=jax.ShapeDtypeStruct((B * S, D), jnp.float32),
        grid_spec=pltpu.PrefetchScalarGridSpec(
            num_scalar_prefetch=0,
            grid=(B // RB, num_layers),                      # (row blocks, layers)
            in_specs=[
                pl.BlockSpec(memory_space=pl.ANY),               # embeddings (HBM)
                pl.BlockSpec((RB, S, S), lambda r, l: (r, 0, 0)),  # additive mask
            ] + [weight_spec(w) for w in weights],
            out_specs=pl.BlockSpec((NBLK, D), lambda r, l: (r, 0)),
            scratch_shapes=[
                pltpu.VMEM((NBLK, D), jnp.float32),   # resident activation carry
                pltpu.SemaphoreType.DMA,              # embeddings load
            ],
        ),
        compiler_params=pltpu.CompilerParams(
            dimension_semantics=("parallel", "arbitrary"),
            vmem_limit_bytes=vmem_limit),
    )(x_flat, amask, *weights)


# ---------------------------------------------------------------------------
# Parameter init (deterministic, synthetic) and glue
# ---------------------------------------------------------------------------
def init_params(key):
    def nrm(k, shape, scale=0.02):
        return (scale * jax.random.normal(k, shape)).astype(jnp.float32)

    bf = lambda w: w.astype(jnp.bfloat16)
    keys = iter(jax.random.split(key, 16))
    return {
        "tok_emb": nrm(next(keys), (VOCAB, D)),
        "pos_emb": nrm(next(keys), (S, D)),
        # LayerNorm params stay f32 (LN math is f32 in-kernel).
        "ln1w": jnp.ones((L, 1, D), jnp.float32),
        "ln1b": jnp.zeros((L, 1, D), jnp.float32),
        # Matmul weights stored bf16 (native MXU dtype, halves DMA/VMEM);
        # biases stay f32 (added to the f32 accumulator).
        "wqkv": bf(nrm(next(keys), (L, D, 3 * D))),   # q|k|v fused along out dim
        "bqkv": nrm(next(keys), (L, 1, 3 * D)),
        "wo":   bf(nrm(next(keys), (L, H, DH, D))),   # head-major out-projection
        "bo":   nrm(next(keys), (L, 1, D)),
        "ln2w": jnp.ones((L, 1, D), jnp.float32),
        "ln2b": jnp.zeros((L, 1, D), jnp.float32),
        "w1":   bf(nrm(next(keys), (L, D, M))),
        "b1":   nrm(next(keys), (L, 1, M)),
        "w2":   bf(nrm(next(keys), (L, M, D))),
        "b2":   nrm(next(keys), (L, 1, D)),
    }


def build_additive_mask(attention_mask):
    # Causal + padding additive mask; layer-invariant, built once per forward.
    # A fully-padded row degrades to a uniform softmax (never happens with
    # CLIP's BOS token always present).
    i = jnp.arange(S)[:, None]
    j = jnp.arange(S)[None, :]
    causal = jnp.where(j <= i, 0.0, NEG).astype(jnp.float32)          # [S,S]
    pad = jnp.where(attention_mask[:, None, :] > 0, 0.0, NEG)         # [B,1,S]
    return causal[None, :, :] + pad.astype(jnp.float32)               # [B,S,S]


def clip_conditioner_forward(input_ids, attention_mask, params,
                             layer_skip=LAYER_SKIP):
    """Equivalent of CLIPConditioner.forward(input_ids, attention_mask)."""
    # Embedding gather + mask build are glue (plain JAX); the transformer
    # stack is one fused Pallas call over a lane-dense [B*S, D] slab.
    x = params["tok_emb"][input_ids] + params["pos_emb"][None, :, :]   # [B,S,D]
    target = layer_skip % (L + 1)            # index into hidden_states tuple
    if target == 0:
        return x                             # hidden_states[0] = embeddings
    amask = build_additive_mask(attention_mask)
    # Raw hidden state at layer `target` (no final layer norm), as in HF CLIP.
    y = clip_encoder_stack(x.reshape(B * S, D), amask, params, target)
    return y.reshape(B, S, D)


# ---------------------------------------------------------------------------
# Pure-JAX reference (mirrors the kernel's bf16-input / f32-accum matmuls)
# ---------------------------------------------------------------------------
def ref_layer(x, add_mask, params, l):
    xn = _layer_norm(x, params["ln1w"][l], params["ln1b"][l])
    qkv = _mxu_dot(xn, params["wqkv"][l]) + params["bqkv"][l]          # [B,S,3D]
    q, k, v = qkv[..., :D], qkv[..., D:2 * D], qkv[..., 2 * D:]
    qh = q.reshape(B, S, H, DH)
    kh = k.reshape(B, S, H, DH)
    vh = v.reshape(B, S, H, DH)
    s = jnp.einsum('bqhd,bkhd->bhqk',
                   qh.astype(jnp.bfloat16), kh.astype(jnp.bfloat16),
                   preferred_element_type=jnp.float32) * (1.0 / (DH ** 0.5))
    s = s + add_mask[:, None]
    p = jax.nn.softmax(s, axis=-1)
    ctx = jnp.einsum('bhqk,bkhd->bqhd',
                     p.astype(jnp.bfloat16), vh.astype(jnp.bfloat16),
                     preferred_element_type=jnp.float32).reshape(B, S, D)
    wo_full = params["wo"][l].reshape(D, D)   # head-major rows == ctx columns
    h1 = x + _mxu_dot(ctx, wo_full) + params["bo"][l]
    hn = _layer_norm(h1, params["ln2w"][l], params["ln2b"][l])
    m = _mxu_dot(hn, params["w1"][l]) + params["b1"][l]
    m = m * jax.nn.sigmoid(1.702 * m)
    return h1 + _mxu_dot(m, params["w2"][l]) + params["b2"][l]


def ref_forward(input_ids, attention_mask, params, layer_skip=LAYER_SKIP):
    x = params["tok_emb"][input_ids] + params["pos_emb"][None, :, :]
    add_mask = build_additive_mask(attention_mask)
    hidden_states = [x]
    for l in range(L):
        x = ref_layer(x, add_mask, params, l)
        hidden_states.append(x)
    return hidden_states[layer_skip]


# TODO(synk): tokenizer path (text=... branch of forward) has no Pallas
# equivalent (string processing); only the input_ids/attention_mask path is
# implemented.

if __name__ == "__main__":
    key = jax.random.PRNGKey(0)
    k_param, k_ids = jax.random.split(key)

    params = init_params(k_param)
    input_ids = jax.random.randint(k_ids, (B, S), 0, VOCAB, dtype=jnp.int32)
    attention_mask = jnp.array(
        [[1, 1, 1, 1, 1, 1, 1, 1],
         [1, 1, 1, 1, 1, 0, 0, 0]], dtype=jnp.int32)

    # default layer_skip = -1 (last encoder layer, no final LN)
    out = clip_conditioner_forward(input_ids, attention_mask, params)
    out = jax.block_until_ready(out)
    assert out.shape == (B, S, D) and out.dtype == jnp.float32
    ref = ref_forward(input_ids, attention_mask, params)
    assert jnp.allclose(out, ref, atol=1e-3, rtol=1e-3), "mismatch vs reference (-1)"

    # layer_skip = -2 (second-to-last hidden state) exercises num_layers < L
    out2 = jax.block_until_ready(
        clip_conditioner_forward(input_ids, attention_mask, params, layer_skip=-2))
    ref2 = ref_forward(input_ids, attention_mask, params, layer_skip=-2)
    assert jnp.allclose(out2, ref2, atol=1e-3, rtol=1e-3), "mismatch vs reference (-2)"

    print("KERNEL_OK")
</pallas_src>

<mosaic_0001>
module attributes {stable_mosaic.version = 11 : i64} {
  func.func @clip_stack_kernel(%arg0: i32, %arg1: i32, %arg2: memref<16x32xf32, #tpu.memory_space<any>>, %arg3: memref<1x8x8xf32, #tpu.memory_space<vmem>>, %arg4: memref<1x1x32xf32, #tpu.memory_space<vmem>>, %arg5: memref<1x1x32xf32, #tpu.memory_space<vmem>>, %arg6: memref<1x32x96xbf16, #tpu.memory_space<vmem>>, %arg7: memref<1x1x96xf32, #tpu.memory_space<vmem>>, %arg8: memref<1x4x8x32xbf16, #tpu.memory_space<vmem>>, %arg9: memref<1x1x32xf32, #tpu.memory_space<vmem>>, %arg10: memref<1x1x32xf32, #tpu.memory_space<vmem>>, %arg11: memref<1x1x32xf32, #tpu.memory_space<vmem>>, %arg12: memref<1x32x128xbf16, #tpu.memory_space<vmem>>, %arg13: memref<1x1x128xf32, #tpu.memory_space<vmem>>, %arg14: memref<1x128x32xbf16, #tpu.memory_space<vmem>>, %arg15: memref<1x1x32xf32, #tpu.memory_space<vmem>>, %arg16: memref<8x32xf32, #tpu.memory_space<vmem>>, %arg17: memref<8x32xf32, #tpu.memory_space<vmem>>, %arg18: memref<!tpu.dma_semaphore, #tpu.memory_space<semaphore_mem>>) attributes {dimension_semantics = [#tpu.dimension_semantics<parallel>, #tpu.dimension_semantics<arbitrary>], iteration_bounds = array<i64: 2, 2>, scalar_prefetch = 0 : i64, scratch_operands = 2 : i64, tpu.core_type = #tpu.core_type<tc>, window_params = [{}, {transform_indices = @transform_1, window_bounds = array<i64: 1, 8, 8>}, {transform_indices = @transform_2, window_bounds = array<i64: 1, 1, 32>}, {transform_indices = @transform_3, window_bounds = array<i64: 1, 1, 32>}, {transform_indices = @transform_4, window_bounds = array<i64: 1, 32, 96>}, {transform_indices = @transform_5, window_bounds = array<i64: 1, 1, 96>}, {transform_indices = @transform_6, window_bounds = array<i64: 1, 4, 8, 32>}, {transform_indices = @transform_7, window_bounds = array<i64: 1, 1, 32>}, {transform_indices = @transform_8, window_bounds = array<i64: 1, 1, 32>}, {transform_indices = @transform_9, window_bounds = array<i64: 1, 1, 32>}, {transform_indices = @transform_10, window_bounds = array<i64: 1, 32, 128>}, {transform_indices = @transform_11, window_bounds = array<i64: 1, 1, 128>}, {transform_indices = @transform_12, window_bounds = array<i64: 1, 128, 32>}, {transform_indices = @transform_13, window_bounds = array<i64: 1, 1, 32>}, {transform_indices = @transform_14, window_bounds = array<i64: 8, 32>}]} {
    %c0_i32 = arith.constant 0 : i32
    %0 = arith.cmpi eq, %arg1, %c0_i32 : i32
    %1 = arith.extui %0 : i1 to i32
    %c0_i32_0 = arith.constant 0 : i32
    %2 = arith.cmpi ne, %1, %c0_i32_0 : i32
    scf.if %2 {
      %c8_i32 = arith.constant 8 : i32
      %220 = arith.muli %arg0, %c8_i32 : i32
      %221 = tpu.assume_multiple %220, 8 : i32
      %c0_i32_93 = arith.constant 0 : i32
      %222 = tpu.memref_slice %arg2[%221, %c0_i32_93] : memref<16x32xf32, #tpu.memory_space<any>> -> memref<8x32xf32, #tpu.memory_space<any>>
      tpu.enqueue_dma source(%222 : memref<8x32xf32, #tpu.memory_space<any>>) target(%arg17 : memref<8x32xf32, #tpu.memory_space<vmem>>) target_semaphore(%arg18 : memref<!tpu.dma_semaphore, #tpu.memory_space<semaphore_mem>>)
      %c0_i32_94 = arith.constant 0 : i32
      %223 = tpu.memref_slice %arg2[%221, %c0_i32_94] : memref<16x32xf32, #tpu.memory_space<any>> -> memref<8x32xf32, #tpu.memory_space<any>>
      tpu.wait_dma2 semaphore(%arg18 : memref<!tpu.dma_semaphore, #tpu.memory_space<semaphore_mem>>) src(%223 : memref<8x32xf32, #tpu.memory_space<any>>) dst(%arg17 : memref<8x32xf32, #tpu.memory_space<vmem>>)
    } else {
    }
    %c0 = arith.constant 0 : index
    %c0_1 = arith.constant 0 : index
    %3 = vector.load %arg17[%c0, %c0_1] : memref<8x32xf32, #tpu.memory_space<vmem>>, vector<8x32xf32>
    %c0_2 = arith.constant 0 : index
    %c0_3 = arith.constant 0 : index
    %c0_4 = arith.constant 0 : index
    %4 = vector.load %arg4[%c0_2, %c0_3, %c0_4] : memref<1x1x32xf32, #tpu.memory_space<vmem>>, vector<1x1x32xf32>
    %5 = vector.shape_cast %4 : vector<1x1x32xf32> to vector<1x32xf32>
    %c0_5 = arith.constant 0 : index
    %c0_6 = arith.constant 0 : index
    %c0_7 = arith.constant 0 : index
    %6 = vector.load %arg5[%c0_5, %c0_6, %c0_7] : memref<1x1x32xf32, #tpu.memory_space<vmem>>, vector<1x1x32xf32>
    %7 = vector.shape_cast %6 : vector<1x1x32xf32> to vector<1x32xf32>
    %cst = arith.constant dense<0.000000e+00> : vector<8xf32>
    %8 = vector.multi_reduction <add>, %3, %cst [1] : vector<8x32xf32> to vector<8xf32>
    %9 = vector.shape_cast %8 : vector<8xf32> to vector<8x1xf32>
    %cst_8 = arith.constant 3.200000e+01 : f32
    %10 = vector.broadcast %cst_8 : f32 to vector<8x1xf32>
    %11 = arith.divf %9, %10 : vector<8x1xf32>
    %12 = vector.broadcast %11 : vector<8x1xf32> to vector<8x32xf32>
    %13 = arith.subf %3, %12 : vector<8x32xf32>
    %14 = arith.mulf %13, %13 : vector<8x32xf32>
    %cst_9 = arith.constant dense<0.000000e+00> : vector<8xf32>
    %15 = vector.multi_reduction <add>, %14, %cst_9 [1] : vector<8x32xf32> to vector<8xf32>
    %16 = vector.shape_cast %15 : vector<8xf32> to vector<8x1xf32>
    %cst_10 = arith.constant 3.200000e+01 : f32
    %17 = vector.broadcast %cst_10 : f32 to vector<8x1xf32>
    %18 = arith.divf %16, %17 : vector<8x1xf32>
    %19 = vector.broadcast %11 : vector<8x1xf32> to vector<8x32xf32>
    %20 = arith.subf %3, %19 : vector<8x32xf32>
    %cst_11 = arith.constant 9.99999974E-6 : f32
    %21 = vector.broadcast %cst_11 : f32 to vector<8x1xf32>
    %22 = arith.addf %18, %21 : vector<8x1xf32>
    %23 = math.rsqrt %22 : vector<8x1xf32>
    %24 = vector.broadcast %23 : vector<8x1xf32> to vector<8x32xf32>
    %25 = arith.mulf %20, %24 : vector<8x32xf32>
    %26 = vector.broadcast %5 : vector<1x32xf32> to vector<8x32xf32>
    %27 = arith.mulf %25, %26 : vector<8x32xf32>
    %28 = vector.broadcast %7 : vector<1x32xf32> to vector<8x32xf32>
    %29 = arith.addf %27, %28 : vector<8x32xf32>
    %c0_12 = arith.constant 0 : index
    %c0_13 = arith.constant 0 : index
    %c0_14 = arith.constant 0 : index
    %30 = vector.load %arg6[%c0_12, %c0_13, %c0_14] : memref<1x32x96xbf16, #tpu.memory_space<vmem>>, vector<1x32x96xbf16>
    %31 = vector.shape_cast %30 : vector<1x32x96xbf16> to vector<32x96xbf16>
    %32 = arith.truncf %29 : vector<8x32xf32> to vector<8x32xbf16>
    %cst_15 = arith.constant dense<0.000000e+00> : vector<8x96xf32>
    %33 = tpu.matmul %32, %31, %cst_15 {dimension_numbers = #tpu.dot_dimension_numbers<[1], [0], [0], [1], [0, 0, 1, 1], [], []>} : vector<8x32xbf16>, vector<32x96xbf16>, vector<8x96xf32> -> vector<8x96xf32>
    %c0_16 = arith.constant 0 : index
    %c0_17 = arith.constant 0 : index
    %c0_18 = arith.constant 0 : index
    %34 = vector.load %arg7[%c0_16, %c0_17, %c0_18] : memref<1x1x96xf32, #tpu.memory_space<vmem>>, vector<1x1x96xf32>
    %35 = vector.shape_cast %34 : vector<1x1x96xf32> to vector<1x96xf32>
    %36 = vector.broadcast %35 : vector<1x96xf32> to vector<8x96xf32>
    %37 = arith.addf %33, %36 : vector<8x96xf32>
    %c0_19 = arith.constant 0 : index
    %c0_20 = arith.constant 0 : index
    %c0_21 = arith.constant 0 : index
    %38 = vector.load %arg3[%c0_19, %c0_20, %c0_21] : memref<1x8x8xf32, #tpu.memory_space<vmem>>, vector<1x8x8xf32>
    %cst_22 = arith.constant 0.000000e+00 : f32
    %39 = vector.broadcast %cst_22 : f32 to vector<8x32xf32>
    %40 = vector.extract_strided_slice %37 {offsets = [0, 0], sizes = [8, 8], strides = [1, 1]} : vector<8x96xf32> to vector<8x8xf32>
    %41 = vector.shape_cast %40 : vector<8x8xf32> to vector<1x8x8xf32>
    %42 = vector.extract_strided_slice %37 {offsets = [0, 32], sizes = [8, 8], strides = [1, 1]} : vector<8x96xf32> to vector<8x8xf32>
    %43 = vector.shape_cast %42 : vector<8x8xf32> to vector<1x8x8xf32>
    %44 = vector.extract_strided_slice %37 {offsets = [0, 64], sizes = [8, 8], strides = [1, 1]} : vector<8x96xf32> to vector<8x8xf32>
    %45 = vector.shape_cast %44 : vector<8x8xf32> to vector<1x8x8xf32>
    %46 = arith.truncf %41 : vector<1x8x8xf32> to vector<1x8x8xbf16>
    %47 = arith.truncf %43 : vector<1x8x8xf32> to vector<1x8x8xbf16>
    "tpu.trace_start"() <{level = 10 : i32, message = "bqd,bkd->bqk"}> : () -> ()
    %cst_23 = arith.constant dense<0.000000e+00> : vector<1x8x8xf32>
    %48 = tpu.matmul %46, %47, %cst_23 {dimension_numbers = #tpu.dot_dimension_numbers<[2], [2], [1], [1], [0, 0, 0, 1, 1, 1], [0], [0]>} : vector<1x8x8xbf16>, vector<1x8x8xbf16>, vector<1x8x8xf32> -> vector<1x8x8xf32>
    "tpu.trace_stop"() : () -> ()
    %cst_24 = arith.constant 0.353553385 : f32
    %49 = vector.broadcast %cst_24 : f32 to vector<1x8x8xf32>
    %50 = arith.mulf %48, %49 : vector<1x8x8xf32>
    %51 = arith.addf %50, %38 : vector<1x8x8xf32>
    %cst_25 = arith.constant dense<0xFF800000> : vector<1x8xf32>
    %52 = vector.multi_reduction <maximumf>, %51, %cst_25 [2] : vector<1x8x8xf32> to vector<1x8xf32>
    %53 = vector.shape_cast %52 : vector<1x8xf32> to vector<1x8x1xf32>
    %54 = vector.broadcast %53 : vector<1x8x1xf32> to vector<1x8x8xf32>
    %55 = arith.subf %51, %54 : vector<1x8x8xf32>
    %56 = math.exp %55 : vector<1x8x8xf32>
    %cst_26 = arith.constant dense<0.000000e+00> : vector<1x8xf32>
    %57 = vector.multi_reduction <add>, %56, %cst_26 [2] : vector<1x8x8xf32> to vector<1x8xf32>
    %58 = vector.shape_cast %57 : vector<1x8xf32> to vector<1x8x1xf32>
    %59 = vector.broadcast %58 : vector<1x8x1xf32> to vector<1x8x8xf32>
    %60 = arith.divf %56, %59 : vector<1x8x8xf32>
    %61 = arith.truncf %60 : vector<1x8x8xf32> to vector<1x8x8xbf16>
    %62 = arith.truncf %45 : vector<1x8x8xf32> to vector<1x8x8xbf16>
    "tpu.trace_start"() <{level = 10 : i32, message = "bqk,bkd->bqd"}> : () -> ()
    %cst_27 = arith.constant dense<0.000000e+00> : vector<1x8x8xf32>
    %63 = tpu.matmul %61, %62, %cst_27 {dimension_numbers = #tpu.dot_dimension_numbers<[2], [1], [1], [2], [0, 0, 0, 1, 1, 2], [0], [0]>} : vector<1x8x8xbf16>, vector<1x8x8xbf16>, vector<1x8x8xf32> -> vector<1x8x8xf32>
    "tpu.trace_stop"() : () -> ()
    %64 = vector.shape_cast %63 : vector<1x8x8xf32> to vector<8x8xf32>
    %c0_28 = arith.constant 0 : index
    %c0_29 = arith.constant 0 : index
    %c0_30 = arith.constant 0 : index
    %c0_31 = arith.constant 0 : index
    %65 = vector.load %arg8[%c0_28, %c0_29, %c0_30, %c0_31] : memref<1x4x8x32xbf16, #tpu.memory_space<vmem>>, vector<1x1x8x32xbf16>
    %66 = vector.shape_cast %65 : vector<1x1x8x32xbf16> to vector<8x32xbf16>
    %67 = arith.truncf %64 : vector<8x8xf32> to vector<8x8xbf16>
    %cst_32 = arith.constant dense<0.000000e+00> : vector<8x32xf32>
    %68 = tpu.matmul %67, %66, %cst_32 {dimension_numbers = #tpu.dot_dimension_numbers<[1], [0], [0], [1], [0, 0, 1, 1], [], []>} : vector<8x8xbf16>, vector<8x32xbf16>, vector<8x32xf32> -> vector<8x32xf32>
    %69 = arith.addf %39, %68 : vector<8x32xf32>
    %70 = vector.extract_strided_slice %37 {offsets = [0, 8], sizes = [8, 8], strides = [1, 1]} : vector<8x96xf32> to vector<8x8xf32>
    %71 = vector.shape_cast %70 : vector<8x8xf32> to vector<1x8x8xf32>
    %72 = vector.extract_strided_slice %37 {offsets = [0, 40], sizes = [8, 8], strides = [1, 1]} : vector<8x96xf32> to vector<8x8xf32>
    %73 = vector.shape_cast %72 : vector<8x8xf32> to vector<1x8x8xf32>
    %74 = vector.extract_strided_slice %37 {offsets = [0, 72], sizes = [8, 8], strides = [1, 1]} : vector<8x96xf32> to vector<8x8xf32>
    %75 = vector.shape_cast %74 : vector<8x8xf32> to vector<1x8x8xf32>
    %76 = arith.truncf %71 : vector<1x8x8xf32> to vector<1x8x8xbf16>
    %77 = arith.truncf %73 : vector<1x8x8xf32> to vector<1x8x8xbf16>
    "tpu.trace_start"() <{level = 10 : i32, message = "bqd,bkd->bqk"}> : () -> ()
    %cst_33 = arith.constant dense<0.000000e+00> : vector<1x8x8xf32>
    %78 = tpu.matmul %76, %77, %cst_33 {dimension_numbers = #tpu.dot_dimension_numbers<[2], [2], [1], [1], [0, 0, 0, 1, 1, 1], [0], [0]>} : vector<1x8x8xbf16>, vector<1x8x8xbf16>, vector<1x8x8xf32> -> vector<1x8x8xf32>
    "tpu.trace_stop"() : () -> ()
    %cst_34 = arith.constant 0.353553385 : f32
    %79 = vector.broadcast %cst_34 : f32 to vector<1x8x8xf32>
    %80 = arith.mulf %78, %79 : vector<1x8x8xf32>
    %81 = arith.addf %80, %38 : vector<1x8x8xf32>
    %cst_35 = arith.constant dense<0xFF800000> : vector<1x8xf32>
    %82 = vector.multi_reduction <maximumf>, %81, %cst_35 [2] : vector<1x8x8xf32> to vector<1x8xf32>
    %83 = vector.shape_cast %82 : vector<1x8xf32> to vector<1x8x1xf32>
    %84 = vector.broadcast %83 : vector<1x8x1xf32> to vector<1x8x8xf32>
    %85 = arith.subf %81, %84 : vector<1x8x8xf32>
    %86 = math.exp %85 : vector<1x8x8xf32>
    %cst_36 = arith.constant dense<0.000000e+00> : vector<1x8xf32>
    %87 = vector.multi_reduction <add>, %86, %cst_36 [2] : vector<1x8x8xf32> to vector<1x8xf32>
    %88 = vector.shape_cast %87 : vector<1x8xf32> to vector<1x8x1xf32>
    %89 = vector.broadcast %88 : vector<1x8x1xf32> to vector<1x8x8xf32>
    %90 = arith.divf %86, %89 : vector<1x8x8xf32>
    %91 = arith.truncf %90 : vector<1x8x8xf32> to vector<1x8x8xbf16>
    %92 = arith.truncf %75 : vector<1x8x8xf32> to vector<1x8x8xbf16>
    "tpu.trace_start"() <{level = 10 : i32, message = "bqk,bkd->bqd"}> : () -> ()
    %cst_37 = arith.constant dense<0.000000e+00> : vector<1x8x8xf32>
    %93 = tpu.matmul %91, %92, %cst_37 {dimension_numbers = #tpu.dot_dimension_numbers<[2], [1], [1], [2], [0, 0, 0, 1, 1, 2], [0], [0]>} : vector<1x8x8xbf16>, vector<1x8x8xbf16>, vector<1x8x8xf32> -> vector<1x8x8xf32>
    "tpu.trace_stop"() : () -> ()
    %94 = vector.shape_cast %93 : vector<1x8x8xf32> to vector<8x8xf32>
    %c0_38 = arith.constant 0 : index
    %c1 = arith.constant 1 : index
    %c0_39 = arith.constant 0 : index
    %c0_40 = arith.constant 0 : index
    %95 = vector.load %arg8[%c0_38, %c1, %c0_39, %c0_40] : memref<1x4x8x32xbf16, #tpu.memory_space<vmem>>, vector<1x1x8x32xbf16>
    %96 = vector.shape_cast %95 : vector<1x1x8x32xbf16> to vector<8x32xbf16>
    %97 = arith.truncf %94 : vector<8x8xf32> to vector<8x8xbf16>
    %cst_41 = arith.constant dense<0.000000e+00> : vector<8x32xf32>
    %98 = tpu.matmul %97, %96, %cst_41 {dimension_numbers = #tpu.dot_dimension_numbers<[1], [0], [0], [1], [0, 0, 1, 1], [], []>} : vector<8x8xbf16>, vector<8x32xbf16>, vector<8x32xf32> -> vector<8x32xf32>
    %99 = arith.addf %69, %98 : vector<8x32xf32>
    %100 = vector.extract_strided_slice %37 {offsets = [0, 16], sizes = [8, 8], strides = [1, 1]} : vector<8x96xf32> to vector<8x8xf32>
    %101 = vector.shape_cast %100 : vector<8x8xf32> to vector<1x8x8xf32>
    %102 = vector.extract_strided_slice %37 {offsets = [0, 48], sizes = [8, 8], strides = [1, 1]} : vector<8x96xf32> to vector<8x8xf32>
    %103 = vector.shape_cast %102 : vector<8x8xf32> to vector<1x8x8xf32>
    %104 = vector.extract_strided_slice %37 {offsets = [0, 80], sizes = [8, 8], strides = [1, 1]} : vector<8x96xf32> to vector<8x8xf32>
    %105 = vector.shape_cast %104 : vector<8x8xf32> to vector<1x8x8xf32>
    %106 = arith.truncf %101 : vector<1x8x8xf32> to vector<1x8x8xbf16>
    %107 = arith.truncf %103 : vector<1x8x8xf32> to vector<1x8x8xbf16>
    "tpu.trace_start"() <{level = 10 : i32, message = "bqd,bkd->bqk"}> : () -> ()
    %cst_42 = arith.constant dense<0.000000e+00> : vector<1x8x8xf32>
    %108 = tpu.matmul %106, %107, %cst_42 {dimension_numbers = #tpu.dot_dimension_numbers<[2], [2], [1], [1], [0, 0, 0, 1, 1, 1], [0], [0]>} : vector<1x8x8xbf16>, vector<1x8x8xbf16>, vector<1x8x8xf32> -> vector<1x8x8xf32>
    "tpu.trace_stop"() : () -> ()
    %cst_43 = arith.constant 0.353553385 : f32
    %109 = vector.broadcast %cst_43 : f32 to vector<1x8x8xf32>
    %110 = arith.mulf %108, %109 : vector<1x8x8xf32>
    %111 = arith.addf %110, %38 : vector<1x8x8xf32>
    %cst_44 = arith.constant dense<0xFF800000> : vector<1x8xf32>
    %112 = vector.multi_reduction <maximumf>, %111, %cst_44 [2] : vector<1x8x8xf32> to vector<1x8xf32>
    %113 = vector.shape_cast %112 : vector<1x8xf32> to vector<1x8x1xf32>
    %114 = vector.broadcast %113 : vector<1x8x1xf32> to vector<1x8x8xf32>
    %115 = arith.subf %111, %114 : vector<1x8x8xf32>
    %116 = math.exp %115 : vector<1x8x8xf32>
    %cst_45 = arith.constant dense<0.000000e+00> : vector<1x8xf32>
    %117 = vector.multi_reduction <add>, %116, %cst_45 [2] : vector<1x8x8xf32> to vector<1x8xf32>
    %118 = vector.shape_cast %117 : vector<1x8xf32> to vector<1x8x1xf32>
    %119 = vector.broadcast %118 : vector<1x8x1xf32> to vector<1x8x8xf32>
    %120 = arith.divf %116, %119 : vector<1x8x8xf32>
    %121 = arith.truncf %120 : vector<1x8x8xf32> to vector<1x8x8xbf16>
    %122 = arith.truncf %105 : vector<1x8x8xf32> to vector<1x8x8xbf16>
    "tpu.trace_start"() <{level = 10 : i32, message = "bqk,bkd->bqd"}> : () -> ()
    %cst_46 = arith.constant dense<0.000000e+00> : vector<1x8x8xf32>
    %123 = tpu.matmul %121, %122, %cst_46 {dimension_numbers = #tpu.dot_dimension_numbers<[2], [1], [1], [2], [0, 0, 0, 1, 1, 2], [0], [0]>} : vector<1x8x8xbf16>, vector<1x8x8xbf16>, vector<1x8x8xf32> -> vector<1x8x8xf32>
    "tpu.trace_stop"() : () -> ()
    %124 = vector.shape_cast %123 : vector<1x8x8xf32> to vector<8x8xf32>
    %c0_47 = arith.constant 0 : index
    %c2 = arith.constant 2 : index
    %c0_48 = arith.constant 0 : index
    %c0_49 = arith.constant 0 : index
    %125 = vector.load %arg8[%c0_47, %c2, %c0_48, %c0_49] : memref<1x4x8x32xbf16, #tpu.memory_space<vmem>>, vector<1x1x8x32xbf16>
    %126 = vector.shape_cast %125 : vector<1x1x8x32xbf16> to vector<8x32xbf16>
    %127 = arith.truncf %124 : vector<8x8xf32> to vector<8x8xbf16>
    %cst_50 = arith.constant dense<0.000000e+00> : vector<8x32xf32>
    %128 = tpu.matmul %127, %126, %cst_50 {dimension_numbers = #tpu.dot_dimension_numbers<[1], [0], [0], [1], [0, 0, 1, 1], [], []>} : vector<8x8xbf16>, vector<8x32xbf16>, vector<8x32xf32> -> vector<8x32xf32>
    %129 = arith.addf %99, %128 : vector<8x32xf32>
    %130 = vector.extract_strided_slice %37 {offsets = [0, 24], sizes = [8, 8], strides = [1, 1]} : vector<8x96xf32> to vector<8x8xf32>
    %131 = vector.shape_cast %130 : vector<8x8xf32> to vector<1x8x8xf32>
    %132 = vector.extract_strided_slice %37 {offsets = [0, 56], sizes = [8, 8], strides = [1, 1]} : vector<8x96xf32> to vector<8x8xf32>
    %133 = vector.shape_cast %132 : vector<8x8xf32> to vector<1x8x8xf32>
    %134 = vector.extract_strided_slice %37 {offsets = [0, 88], sizes = [8, 8], strides = [1, 1]} : vector<8x96xf32> to vector<8x8xf32>
    %135 = vector.shape_cast %134 : vector<8x8xf32> to vector<1x8x8xf32>
    %136 = arith.truncf %131 : vector<1x8x8xf32> to vector<1x8x8xbf16>
    %137 = arith.truncf %133 : vector<1x8x8xf32> to vector<1x8x8xbf16>
    "tpu.trace_start"() <{level = 10 : i32, message = "bqd,bkd->bqk"}> : () -> ()
    %cst_51 = arith.constant dense<0.000000e+00> : vector<1x8x8xf32>
    %138 = tpu.matmul %136, %137, %cst_51 {dimension_numbers = #tpu.dot_dimension_numbers<[2], [2], [1], [1], [0, 0, 0, 1, 1, 1], [0], [0]>} : vector<1x8x8xbf16>, vector<1x8x8xbf16>, vector<1x8x8xf32> -> vector<1x8x8xf32>
    "tpu.trace_stop"() : () -> ()
    %cst_52 = arith.constant 0.353553385 : f32
    %139 = vector.broadcast %cst_52 : f32 to vector<1x8x8xf32>
    %140 = arith.mulf %138, %139 : vector<1x8x8xf32>
    %141 = arith.addf %140, %38 : vector<1x8x8xf32>
    %cst_53 = arith.constant dense<0xFF800000> : vector<1x8xf32>
    %142 = vector.multi_reduction <maximumf>, %141, %cst_53 [2] : vector<1x8x8xf32> to vector<1x8xf32>
    %143 = vector.shape_cast %142 : vector<1x8xf32> to vector<1x8x1xf32>
    %144 = vector.broadcast %143 : vector<1x8x1xf32> to vector<1x8x8xf32>
    %145 = arith.subf %141, %144 : vector<1x8x8xf32>
    %146 = math.exp %145 : vector<1x8x8xf32>
    %cst_54 = arith.constant dense<0.000000e+00> : vector<1x8xf32>
    %147 = vector.multi_reduction <add>, %146, %cst_54 [2] : vector<1x8x8xf32> to vector<1x8xf32>
    %148 = vector.shape_cast %147 : vector<1x8xf32> to vector<1x8x1xf32>
    %149 = vector.broadcast %148 : vector<1x8x1xf32> to vector<1x8x8xf32>
    %150 = arith.divf %146, %149 : vector<1x8x8xf32>
    %151 = arith.truncf %150 : vector<1x8x8xf32> to vector<1x8x8xbf16>
    %152 = arith.truncf %135 : vector<1x8x8xf32> to vector<1x8x8xbf16>
    "tpu.trace_start"() <{level = 10 : i32, message = "bqk,bkd->bqd"}> : () -> ()
    %cst_55 = arith.constant dense<0.000000e+00> : vector<1x8x8xf32>
    %153 = tpu.matmul %151, %152, %cst_55 {dimension_numbers = #tpu.dot_dimension_numbers<[2], [1], [1], [2], [0, 0, 0, 1, 1, 2], [0], [0]>} : vector<1x8x8xbf16>, vector<1x8x8xbf16>, vector<1x8x8xf32> -> vector<1x8x8xf32>
    "tpu.trace_stop"() : () -> ()
    %154 = vector.shape_cast %153 : vector<1x8x8xf32> to vector<8x8xf32>
    %c0_56 = arith.constant 0 : index
    %c3 = arith.constant 3 : index
    %c0_57 = arith.constant 0 : index
    %c0_58 = arith.constant 0 : index
    %155 = vector.load %arg8[%c0_56, %c3, %c0_57, %c0_58] : memref<1x4x8x32xbf16, #tpu.memory_space<vmem>>, vector<1x1x8x32xbf16>
    %156 = vector.shape_cast %155 : vector<1x1x8x32xbf16> to vector<8x32xbf16>
    %157 = arith.truncf %154 : vector<8x8xf32> to vector<8x8xbf16>
    %cst_59 = arith.constant dense<0.000000e+00> : vector<8x32xf32>
    %158 = tpu.matmul %157, %156, %cst_59 {dimension_numbers = #tpu.dot_dimension_numbers<[1], [0], [0], [1], [0, 0, 1, 1], [], []>} : vector<8x8xbf16>, vector<8x32xbf16>, vector<8x32xf32> -> vector<8x32xf32>
    %159 = arith.addf %129, %158 : vector<8x32xf32>
    %160 = arith.addf %3, %159 : vector<8x32xf32>
    %c0_60 = arith.constant 0 : index
    %c0_61 = arith.constant 0 : index
    %c0_62 = arith.constant 0 : index
    %161 = vector.load %arg9[%c0_60, %c0_61, %c0_62] : memref<1x1x32xf32, #tpu.memory_space<vmem>>, vector<1x1x32xf32>
    %162 = vector.shape_cast %161 : vector<1x1x32xf32> to vector<1x32xf32>
    %163 = vector.broadcast %162 : vector<1x32xf32> to vector<8x32xf32>
    %164 = arith.addf %160, %163 : vector<8x32xf32>
    %c0_63 = arith.constant 0 : index
    %c0_64 = arith.constant 0 : index
    %c0_65 = arith.constant 0 : index
    %165 = vector.load %arg10[%c0_63, %c0_64, %c0_65] : memref<1x1x32xf32, #tpu.memory_space<vmem>>, vector<1x1x32xf32>
    %166 = vector.shape_cast %165 : vector<1x1x32xf32> to vector<1x32xf32>
    %c0_66 = arith.constant 0 : index
    %c0_67 = arith.constant 0 : index
    %c0_68 = arith.constant 0 : index
    %167 = vector.load %arg11[%c0_66, %c0_67, %c0_68] : memref<1x1x32xf32, #tpu.memory_space<vmem>>, vector<1x1x32xf32>
    %168 = vector.shape_cast %167 : vector<1x1x32xf32> to vector<1x32xf32>
    %cst_69 = arith.constant dense<0.000000e+00> : vector<8xf32>
    %169 = vector.multi_reduction <add>, %164, %cst_69 [1] : vector<8x32xf32> to vector<8xf32>
    %170 = vector.shape_cast %169 : vector<8xf32> to vector<8x1xf32>
    %cst_70 = arith.constant 3.200000e+01 : f32
    %171 = vector.broadcast %cst_70 : f32 to vector<8x1xf32>
    %172 = arith.divf %170, %171 : vector<8x1xf32>
    %173 = vector.broadcast %172 : vector<8x1xf32> to vector<8x32xf32>
    %174 = arith.subf %164, %173 : vector<8x32xf32>
    %175 = arith.mulf %174, %174 : vector<8x32xf32>
    %cst_71 = arith.constant dense<0.000000e+00> : vector<8xf32>
    %176 = vector.multi_reduction <add>, %175, %cst_71 [1] : vector<8x32xf32> to vector<8xf32>
    %177 = vector.shape_cast %176 : vector<8xf32> to vector<8x1xf32>
    %cst_72 = arith.constant 3.200000e+01 : f32
    %178 = vector.broadcast %cst_72 : f32 to vector<8x1xf32>
    %179 = arith.divf %177, %178 : vector<8x1xf32>
    %180 = vector.broadcast %172 : vector<8x1xf32> to vector<8x32xf32>
    %181 = arith.subf %164, %180 : vector<8x32xf32>
    %cst_73 = arith.constant 9.99999974E-6 : f32
    %182 = vector.broadcast %cst_73 : f32 to vector<8x1xf32>
    %183 = arith.addf %179, %182 : vector<8x1xf32>
    %184 = math.rsqrt %183 : vector<8x1xf32>
    %185 = vector.broadcast %184 : vector<8x1xf32> to vector<8x32xf32>
    %186 = arith.mulf %181, %185 : vector<8x32xf32>
    %187 = vector.broadcast %166 : vector<1x32xf32> to vector<8x32xf32>
    %188 = arith.mulf %186, %187 : vector<8x32xf32>
    %189 = vector.broadcast %168 : vector<1x32xf32> to vector<8x32xf32>
    %190 = arith.addf %188, %189 : vector<8x32xf32>
    %c0_74 = arith.constant 0 : index
    %c0_75 = arith.constant 0 : index
    %c0_76 = arith.constant 0 : index
    %191 = vector.load %arg12[%c0_74, %c0_75, %c0_76] : memref<1x32x128xbf16, #tpu.memory_space<vmem>>, vector<1x32x128xbf16>
    %192 = vector.shape_cast %191 : vector<1x32x128xbf16> to vector<32x128xbf16>
    %193 = arith.truncf %190 : vector<8x32xf32> to vector<8x32xbf16>
    %cst_77 = arith.constant dense<0.000000e+00> : vector<8x128xf32>
    %194 = tpu.matmul %193, %192, %cst_77 {dimension_numbers = #tpu.dot_dimension_numbers<[1], [0], [0], [1], [0, 0, 1, 1], [], []>} : vector<8x32xbf16>, vector<32x128xbf16>, vector<8x128xf32> -> vector<8x128xf32>
    %c0_78 = arith.constant 0 : index
    %c0_79 = arith.constant 0 : index
    %c0_80 = arith.constant 0 : index
    %195 = vector.load %arg13[%c0_78, %c0_79, %c0_80] : memref<1x1x128xf32, #tpu.memory_space<vmem>>, vector<1x1x128xf32>
    %196 = vector.shape_cast %195 : vector<1x1x128xf32> to vector<1x128xf32>
    %197 = vector.broadcast %196 : vector<1x128xf32> to vector<8x128xf32>
    %198 = arith.addf %194, %197 : vector<8x128xf32>
    %cst_81 = arith.constant 1.702000e+00 : f32
    %199 = vector.broadcast %cst_81 : f32 to vector<8x128xf32>
    %200 = arith.mulf %199, %198 : vector<8x128xf32>
    %201 = arith.negf %200 : vector<8x128xf32>
    %202 = math.exp %201 : vector<8x128xf32>
    %cst_82 = arith.constant 1.000000e+00 : f32
    %203 = vector.broadcast %cst_82 : f32 to vector<8x128xf32>
    %204 = arith.addf %203, %202 : vector<8x128xf32>
    %205 = arith.divf %203, %204 : vector<8x128xf32>
    %206 = arith.mulf %198, %205 : vector<8x128xf32>
    %c0_83 = arith.constant 0 : index
    %c0_84 = arith.constant 0 : index
    %c0_85 = arith.constant 0 : index
    %207 = vector.load %arg14[%c0_83, %c0_84, %c0_85] : memref<1x128x32xbf16, #tpu.memory_space<vmem>>, vector<1x128x32xbf16>
    %208 = vector.shape_cast %207 : vector<1x128x32xbf16> to vector<128x32xbf16>
    %209 = arith.truncf %206 : vector<8x128xf32> to vector<8x128xbf16>
    %cst_86 = arith.constant dense<0.000000e+00> : vector<8x32xf32>
    %210 = tpu.matmul %209, %208, %cst_86 {dimension_numbers = #tpu.dot_dimension_numbers<[1], [0], [0], [1], [0, 0, 1, 1], [], []>} : vector<8x128xbf16>, vector<128x32xbf16>, vector<8x32xf32> -> vector<8x32xf32>
    %211 = arith.addf %164, %210 : vector<8x32xf32>
    %c0_87 = arith.constant 0 : index
    %c0_88 = arith.constant 0 : index
    %c0_89 = arith.constant 0 : index
    %212 = vector.load %arg15[%c0_87, %c0_88, %c0_89] : memref<1x1x32xf32, #tpu.memory_space<vmem>>, vector<1x1x32xf32>
    %213 = vector.shape_cast %212 : vector<1x1x32xf32> to vector<1x32xf32>
    %214 = vector.broadcast %213 : vector<1x32xf32> to vector<8x32xf32>
    %215 = arith.addf %211, %214 : vector<8x32xf32>
    %c0_90 = arith.constant 0 : index
    %c0_91 = arith.constant 0 : index
    %216 = vector.load %arg17[%c0_90, %c0_91] : memref<8x32xf32, #tpu.memory_space<vmem>>, vector<8x32xf32>
    tpu.vector_store %arg17[%c0_90, %c0_91], %215 {strides = array<i32>} : memref<8x32xf32, #tpu.memory_space<vmem>>, vector<8x32xf32>,
    %c1_i32 = arith.constant 1 : i32
    %217 = arith.cmpi eq, %arg1, %c1_i32 : i32
    %218 = arith.extui %217 : i1 to i32
    %c0_i32_92 = arith.constant 0 : i32
    %219 = arith.cmpi ne, %218, %c0_i32_92 : i32
    scf.if %219 {
      %c0_93 = arith.constant 0 : index
      %c0_94 = arith.constant 0 : index
      %220 = vector.load %arg16[%c0_93, %c0_94] : memref<8x32xf32, #tpu.memory_space<vmem>>, vector<8x32xf32>
      tpu.vector_store %arg16[%c0_93, %c0_94], %215 {strides = array<i32>} : memref<8x32xf32, #tpu.memory_space<vmem>>, vector<8x32xf32>,
    } else {
    }
    return
  }
  func.func @transform_1(%arg0: i32, %arg1: i32) -> (i32, i32, i32) {
    %c0_i32 = arith.constant 0 : i32
    %c0_i32_0 = arith.constant 0 : i32
    %c0_i32_1 = arith.constant 0 : i32
    return %arg0, %c0_i32, %c0_i32_0 : i32, i32, i32
  }
  func.func @transform_2(%arg0: i32, %arg1: i32) -> (i32, i32, i32) {
    %c0_i32 = arith.constant 0 : i32
    %c0_i32_0 = arith.constant 0 : i32
    %c0_i32_1 = arith.constant 0 : i32
    return %arg1, %c0_i32, %c0_i32_0 : i32, i32, i32
  }
  func.func @transform_3(%arg0: i32, %arg1: i32) -> (i32, i32, i32) {
    %c0_i32 = arith.constant 0 : i32
    %c0_i32_0 = arith.constant 0 : i32
    %c0_i32_1 = arith.constant 0 : i32
    return %arg1, %c0_i32, %c0_i32_0 : i32, i32, i32
  }
  func.func @transform_4(%arg0: i32, %arg1: i32) -> (i32, i32, i32) {
    %c0_i32 = arith.constant 0 : i32
    %c0_i32_0 = arith.constant 0 : i32
    %c0_i32_1 = arith.constant 0 : i32
    return %arg1, %c0_i32, %c0_i32_0 : i32, i32, i32
  }
  func.func @transform_5(%arg0: i32, %arg1: i32) -> (i32, i32, i32) {
    %c0_i32 = arith.constant 0 : i32
    %c0_i32_0 = arith.constant 0 : i32
    %c0_i32_1 = arith.constant 0 : i32
    return %arg1, %c0_i32, %c0_i32_0 : i32, i32, i32
  }
  func.func @transform_6(%arg0: i32, %arg1: i32) -> (i32, i32, i32, i32) {
    %c0_i32 = arith.constant 0 : i32
    %c0_i32_0 = arith.constant 0 : i32
    %c0_i32_1 = arith.constant 0 : i32
    %c0_i32_2 = arith.constant 0 : i32
    return %arg1, %c0_i32, %c0_i32_0, %c0_i32_1 : i32, i32, i32, i32
  }
  func.func @transform_7(%arg0: i32, %arg1: i32) -> (i32, i32, i32) {
    %c0_i32 = arith.constant 0 : i32
    %c0_i32_0 = arith.constant 0 : i32
    %c0_i32_1 = arith.constant 0 : i32
    return %arg1, %c0_i32, %c0_i32_0 : i32, i32, i32
  }
  func.func @transform_8(%arg0: i32, %arg1: i32) -> (i32, i32, i32) {
    %c0_i32 = arith.constant 0 : i32
    %c0_i32_0 = arith.constant 0 : i32
    %c0_i32_1 = arith.constant 0 : i32
    return %arg1, %c0_i32, %c0_i32_0 : i32, i32, i32
  }
  func.func @transform_9(%arg0: i32, %arg1: i32) -> (i32, i32, i32) {
    %c0_i32 = arith.constant 0 : i32
    %c0_i32_0 = arith.constant 0 : i32
    %c0_i32_1 = arith.constant 0 : i32
    return %arg1, %c0_i32, %c0_i32_0 : i32, i32, i32
  }
  func.func @transform_10(%arg0: i32, %arg1: i32) -> (i32, i32, i32) {
    %c0_i32 = arith.constant 0 : i32
    %c0_i32_0 = arith.constant 0 : i32
    %c0_i32_1 = arith.constant 0 : i32
    return %arg1, %c0_i32, %c0_i32_0 : i32, i32, i32
  }
  func.func @transform_11(%arg0: i32, %arg1: i32) -> (i32, i32, i32) {
    %c0_i32 = arith.constant 0 : i32
    %c0_i32_0 = arith.constant 0 : i32
    %c0_i32_1 = arith.constant 0 : i32
    return %arg1, %c0_i32, %c0_i32_0 : i32, i32, i32
  }
  func.func @transform_12(%arg0: i32, %arg1: i32) -> (i32, i32, i32) {
    %c0_i32 = arith.constant 0 : i32
    %c0_i32_0 = arith.constant 0 : i32
    %c0_i32_1 = arith.constant 0 : i32
    return %arg1, %c0_i32, %c0_i32_0 : i32, i32, i32
  }
  func.func @transform_13(%arg0: i32, %arg1: i32) -> (i32, i32, i32) {
    %c0_i32 = arith.constant 0 : i32
    %c0_i32_0 = arith.constant 0 : i32
    %c0_i32_1 = arith.constant 0 : i32
    return %arg1, %c0_i32, %c0_i32_0 : i32, i32, i32
  }
  func.func @transform_14(%arg0: i32, %arg1: i32) -> (i32, i32) {
    %c0_i32 = arith.constant 0 : i32
    %c0_i32_0 = arith.constant 0 : i32
    return %arg0, %c0_i32 : i32, i32
  }
}

</mosaic_0001>

<llo_original>
// kernel: tpu_custom_call.1
$region0: #{tpu_custom_call.1}
  #allocation0 [shape = 'u32[]', space=smem, size = 0x4, offset = 0x4, fixed_abs, tag = 'smem constant byte address 0x4 - core index']
  #allocation1 [shape = 'u32[72,128]{1,0:T(1,128)}', space=vmem, size = 0x9000, scoped, tag = 'internal scratch']
  #allocation2 [shape = 'f32[8,32]{1,0:T(8,128)}', space=vmem, size = 0x1000, scoped, tag = 'scratch operand']
  #allocation3 [shape = 's32[1]{0}', space=sflag, size = 0x4, scoped, tag = 'scratch operand']
  #allocation6 [shape = 's32[]', space=sflag, size = 0x4, offset = 0, fixed_abs, tag = 'sflag constant byte address 0x0 - dummy sync flag']
  %s0 = inlined_call_operand.vmem [shape: f32[16,32], index: 0, kind: input, shape index: {}]
  %s1 = inlined_call_operand.vmem [shape: f32[2,8,8], index: 1, kind: input, shape index: {}]
  %s2 = inlined_call_operand.vmem [shape: f32[2,1,32], index: 2, kind: input, shape index: {}]
  %s3 = inlined_call_operand.vmem [shape: f32[2,1,32], index: 3, kind: input, shape index: {}]
  %s4 = inlined_call_operand.vmem [shape: bf16[2,32,96], index: 4, kind: input, shape index: {}]
  %s5 = inlined_call_operand.vmem [shape: f32[2,1,96], index: 5, kind: input, shape index: {}]
  %s6 = inlined_call_operand.vmem [shape: bf16[2,4,8,32], index: 6, kind: input, shape index: {}]
  %s7 = inlined_call_operand.vmem [shape: f32[2,1,32], index: 7, kind: input, shape index: {}]
  %s8 = inlined_call_operand.vmem [shape: f32[2,1,32], index: 8, kind: input, shape index: {}]
  %s9 = inlined_call_operand.vmem [shape: f32[2,1,32], index: 9, kind: input, shape index: {}]
  %s10 = inlined_call_operand.vmem [shape: bf16[2,32,128], index: 10, kind: input, shape index: {}]
  %s11 = inlined_call_operand.vmem [shape: f32[2,1,128], index: 11, kind: input, shape index: {}]
  %s12 = inlined_call_operand.vmem [shape: bf16[2,128,32], index: 12, kind: input, shape index: {}]
  %s13 = inlined_call_operand.vmem [shape: f32[2,1,32], index: 13, kind: input, shape index: {}]
  %s14 = inlined_call_operand.hbm [shape: f32[16,32], index: 14, kind: output, shape index: {}]
  %s15 = sld [smem:[#allocation0]]
  $region127: #{tpu_custom_call.1} parent=0
    _
  %s17 = ssub.s32 1, %s15
  %s18 = scalar_select 0, %s17, %s15
  $region1: #{tpu_custom_call.1} parent=0
    #allocation4 [shape = 'u8[8192]{0}', space=vmem, size = 0x2000, scoped, tag = 'output window, operand 0']
    #allocation5 [shape = 's32[2]{0}', space=sflag, size = 0x8, scoped, tag = 'scoped memory for tpu_custom_call.1']
    %19 = vsyncpa [#allocation5], 0
    %s20 = scalar_lea.sflag [#allocation5], 1
    %21 = vsyncpa %s20, 0
    loop: start=0, step=1, limit=6
    $region2: #{tpu_custom_call.1} parent=1 // loop_pre_header
      _
    $region3: #{tpu_custom_call.1} parent=1 // loop_header
      %s23 = sphi 0, %s27
      %p24 = scmp.ge.s32.totalorder %s23, 6
      %s30 = sphi 0, %s42
      %s31 = sphi 0, %s38
      %s32 = sphi 0, %s30
      %s33 = sphi 0, %s31
      %s34 = sphi 0, %s32
      %s35 = sphi 0, %s33
      %s45 = sphi 0, %s47
      %s48 = sphi 0, %s45
      %s49 = sphi 0, %s48
      %s65 = sphi 0, %s49
      %s71 = sphi 0, %s73
      %s74 = sphi 0, %s71
      %s75 = sphi 0, %s74
      %s91 = sphi 0, %s75
      %s97 = sphi 0, %s99
      %s100 = sphi 0, %s97
      %s101 = sphi 0, %s100
      %s117 = sphi 0, %s101
      %s123 = sphi 0, %s125
      %s126 = sphi 0, %s123
      %s127 = sphi 0, %s126
      %s143 = sphi 0, %s127
      %s149 = sphi 0, %s151
      %s152 = sphi 0, %s149
      %s153 = sphi 0, %s152
      %s169 = sphi 0, %s153
      %s175 = sphi 0, %s177
      %s178 = sphi 0, %s175
      %s179 = sphi 0, %s178
      %s195 = sphi 0, %s179
      %s201 = sphi 0, %s203
      %s204 = sphi 0, %s201
      %s205 = sphi 0, %s204
      %s221 = sphi 0, %s205
      %s227 = sphi 0, %s229
      %s230 = sphi 0, %s227
      %s231 = sphi 0, %s230
      %s247 = sphi 0, %s231
      %s253 = sphi 0, %s255
      %s256 = sphi 0, %s253
      %s257 = sphi 0, %s256
      %s273 = sphi 0, %s257
      %s279 = sphi 0, %s281
      %s282 = sphi 0, %s279
      %s283 = sphi 0, %s282
      %s299 = sphi 0, %s283
      %s305 = sphi 0, %s307
      %s308 = sphi 0, %s305
      %s309 = sphi 0, %s308
      %s325 = sphi 0, %s309
      %s331 = sphi 0, %s333
      %s334 = sphi 0, %s331
      %s335 = sphi 0, %s334
      %s351 = sphi 0, %s335
      %s357 = sphi 0, %s359
      %s360 = sphi 0, %s357
      %s361 = sphi 0, %s360
      %s377 = sphi 0, %s361
      %s383 = sphi 0, %s385
      %s386 = sphi 0, %s383
      %s387 = sphi 0, %s386
      %s403 = sphi 0, %s387
    $region4: #{tpu_custom_call.1} parent=1 // loop_header_branch
      %26 = sbr.rel (%p24) target = $region8
    $region5: #{tpu_custom_call.1} parent=1 // loop_body
      %s28 = ssub.s32 %s23, 1
      %s29 = ssub.s32 %s23, 2
      %s36 = sadd.s32 1, %s31
      %p37 = scmp.ge.s32.totalorder %s36, 2
      %s38 = scalar_select %p37, 0, %s36
      %s39 = sadd.s32 1, %s30
      %s40 = scalar_select %p37, %s39, %s30
      %p41 = scmp.ge.s32.totalorder %s40, 2
      %s42 = scalar_select %p41, 0, %s40
      %s43 = ssub.s32 %s30, %s42
      %p44 = scmp.eq.s32.totalorder %s43, 0
      %s46 = sadd.s32 %s45, 1
      %s47 = scalar_select %p44, %s45, %s46
      %p50 = pneg %p44
      %p51 = scmp.eq.s32.totalorder %s23, 3
      %p52 = por %p50, %p51
      %p53 = scmp.ne.s32.totalorder %s45, %s48
      %p54 = scmp.eq.s32.totalorder %s23, 0
      %p55 = por %p53, %p54
      %p56 = scmp.ne.s32.totalorder %s45, %s48
      %p57 = scmp.eq.s32.totalorder %s28, 3
      %p58 = por %p56, %p57
      %p59 = scmp.ne.s32.totalorder %s48, %s49
      %p60 = scmp.eq.s32.totalorder %s28, 0
      %p61 = por %p59, %p60
      %p62 = scmp.ne.s32.totalorder %s48, %s49
      %p63 = scmp.eq.s32.totalorder %s29, 3
      %p64 = por %p62, %p63
      %p66 = scmp.ne.s32.totalorder %s49, %s65
      %p67 = scmp.eq.s32.totalorder %s29, 0
      %p68 = por %p66, %p67
      %s69 = ssub.s32 %s31, %s38
      %p70 = scmp.eq.s32.totalorder %s69, 0
      %s72 = sadd.s32 %s71, 1
      %s73 = scalar_select %p70, %s71, %s72
      %p76 = pneg %p70
      %p77 = scmp.eq.s32.totalorder %s23, 3
      %p78 = por %p76, %p77
      %p79 = scmp.ne.s32.totalorder %s71, %s74
      %p80 = scmp.eq.s32.totalorder %s23, 0
      %p81 = por %p79, %p80
      %p82 = scmp.ne.s32.totalorder %s71, %s74
      %p83 = scmp.eq.s32.totalorder %s28, 3
      %p84 = por %p82, %p83
      %p85 = scmp.ne.s32.totalorder %s74, %s75
      %p86 = scmp.eq.s32.totalorder %s28, 0
      %p87 = por %p85, %p86
      %p88 = scmp.ne.s32.totalorder %s74, %s75
      %p89 = scmp.eq.s32.totalorder %s29, 3
      %p90 = por %p88, %p89
      %p92 = scmp.ne.s32.totalorder %s75, %s91
      %p93 = scmp.eq.s32.totalorder %s29, 0
      %p94 = por %p92, %p93
      %s95 = ssub.s32 %s31, %s38
      %p96 = scmp.eq.s32.totalorder %s95, 0
      %s98 = sadd.s32 %s97, 1
      %s99 = scalar_select %p96, %s97, %s98
      %p102 = pneg %p96
      %p103 = scmp.eq.s32.totalorder %s23, 3
      %p104 = por %p102, %p103
      %p105 = scmp.ne.s32.totalorder %s97, %s100
      %p106 = scmp.eq.s32.totalorder %s23, 0
      %p107 = por %p105, %p106
      %p108 = scmp.ne.s32.totalorder %s97, %s100
      %p109 = scmp.eq.s32.totalorder %s28, 3
      %p110 = por %p108, %p109
      %p111 = scmp.ne.s32.totalorder %s100, %s101
      %p112 = scmp.eq.s32.totalorder %s28, 0
      %p113 = por %p111, %p112
      %p114 = scmp.ne.s32.totalorder %s100, %s101
      %p115 = scmp.eq.s32.totalorder %s29, 3
      %p116 = por %p114, %p115
      %p118 = scmp.ne.s32.totalorder %s101, %s117
      %p119 = scmp.eq.s32.totalorder %s29, 0
      %p120 = por %p118, %p119
      %s121 = ssub.s32 %s31, %s38
      %p122 = scmp.eq.s32.totalorder %s121, 0
      %s124 = sadd.s32 %s123, 1
      %s125 = scalar_select %p122, %s123, %s124
      %p128 = pneg %p122
      %p129 = scmp.eq.s32.totalorder %s23, 3
      %p130 = por %p128, %p129
      %p131 = scmp.ne.s32.totalorder %s123, %s126
      %p132 = scmp.eq.s32.totalorder %s23, 0
      %p133 = por %p131, %p132
      %p134 = scmp.ne.s32.totalorder %s123, %s126
      %p135 = scmp.eq.s32.totalorder %s28, 3
      %p136 = por %p134, %p135
      %p137 = scmp.ne.s32.totalorder %s126, %s127
      %p138 = scmp.eq.s32.totalorder %s28, 0
      %p139 = por %p137, %p138
      %p140 = scmp.ne.s32.totalorder %s126, %s127
      %p141 = scmp.eq.s32.totalorder %s29, 3
      %p142 = por %p140, %p141
      %p144 = scmp.ne.s32.totalorder %s127, %s143
      %p145 = scmp.eq.s32.totalorder %s29, 0
      %p146 = por %p144, %p145
      %s147 = ssub.s32 %s31, %s38
      %p148 = scmp.eq.s32.totalorder %s147, 0
      %s150 = sadd.s32 %s149, 1
      %s151 = scalar_select %p148, %s149, %s150
      %p154 = pneg %p148
      %p155 = scmp.eq.s32.totalorder %s23, 3
      %p156 = por %p154, %p155
      %p157 = scmp.ne.s32.totalorder %s149, %s152
      %p158 = scmp.eq.s32.totalorder %s23, 0
      %p159 = por %p157, %p158
      %p160 = scmp.ne.s32.totalorder %s149, %s152
      %p161 = scmp.eq.s32.totalorder %s28, 3
      %p162 = por %p160, %p161
      %p163 = scmp.ne.s32.totalorder %s152, %s153
      %p164 = scmp.eq.s32.totalorder %s28, 0
      %p165 = por %p163, %p164
      %p166 = scmp.ne.s32.totalorder %s152, %s153
      %p167 = scmp.eq.s32.totalorder %s29, 3
      %p168 = por %p166, %p167
      %p170 = scmp.ne.s32.totalorder %s153, %s169
      %p171 = scmp.eq.s32.totalorder %s29, 0
      %p172 = por %p170, %p171
      %s173 = ssub.s32 %s31, %s38
      %p174 = scmp.eq.s32.totalorder %s173, 0
      %s176 = sadd.s32 %s175, 1
      %s177 = scalar_select %p174, %s175, %s176
      %p180 = pneg %p174
      %p181 = scmp.eq.s32.totalorder %s23, 3
      %p182 = por %p180, %p181
      %p183 = scmp.ne.s32.totalorder %s175, %s178
      %p184 = scmp.eq.s32.totalorder %s23, 0
      %p185 = por %p183, %p184
      %p186 = scmp.ne.s32.totalorder %s175, %s178
      %p187 = scmp.eq.s32.totalorder %s28, 3
      %p188 = por %p186, %p187
      %p189 = scmp.ne.s32.totalorder %s178, %s179
      %p190 = scmp.eq.s32.totalorder %s28, 0
      %p191 = por %p189, %p190
      %p192 = scmp.ne.s32.totalorder %s178, %s179
      %p193 = scmp.eq.s32.totalorder %s29, 3
      %p194 = por %p192, %p193
      %p196 = scmp.ne.s32.totalorder %s179, %s195
      %p197 = scmp.eq.s32.totalorder %s29, 0
      %p198 = por %p196, %p197
      %s199 = ssub.s32 %s31, %s38
      %p200 = scmp.eq.s32.totalorder %s199, 0
      %s202 = sadd.s32 %s201, 1
      %s203 = scalar_select %p200, %s201, %s202
      %p206 = pneg %p200
      %p207 = scmp.eq.s32.totalorder %s23, 3
      %p208 = por %p206, %p207
      %p209 = scmp.ne.s32.totalorder %s201, %s204
      %p210 = scmp.eq.s32.totalorder %s23, 0
      %p211 = por %p209, %p210
      %p212 = scmp.ne.s32.totalorder %s201, %s204
      %p213 = scmp.eq.s32.totalorder %s28, 3
      %p214 = por %p212, %p213
      %p215 = scmp.ne.s32.totalorder %s204, %s205
      %p216 = scmp.eq.s32.totalorder %s28, 0
      %p217 = por %p215, %p216
      %p218 = scmp.ne.s32.totalorder %s204, %s205
      %p219 = scmp.eq.s32.totalorder %s29, 3
      %p220 = por %p218, %p219
      %p222 = scmp.ne.s32.totalorder %s205, %s221
      %p223 = scmp.eq.s32.totalorder %s29, 0
      %p224 = por %p222, %p223
      %s225 = ssub.s32 %s31, %s38
      %p226 = scmp.eq.s32.totalorder %s225, 0
      %s228 = sadd.s32 %s227, 1
      %s229 = scalar_select %p226, %s227, %s228
      %p232 = pneg %p226
      %p233 = scmp.eq.s32.totalorder %s23, 3
      %p234 = por %p232, %p233
      %p235 = scmp.ne.s32.totalorder %s227, %s230
      %p236 = scmp.eq.s32.totalorder %s23, 0
      %p237 = por %p235, %p236
      %p238 = scmp.ne.s32.totalorder %s227, %s230
      %p239 = scmp.eq.s32.totalorder %s28, 3
      %p240 = por %p238, %p239
      %p241 = scmp.ne.s32.totalorder %s230, %s231
      %p242 = scmp.eq.s32.totalorder %s28, 0
      %p243 = por %p241, %p242
      %p244 = scmp.ne.s32.totalorder %s230, %s231
      %p245 = scmp.eq.s32.totalorder %s29, 3
      %p246 = por %p244, %p245
      %p248 = scmp.ne.s32.totalorder %s231, %s247
      %p249 = scmp.eq.s32.totalorder %s29, 0
      %p250 = por %p248, %p249
      %s251 = ssub.s32 %s31, %s38
      %p252 = scmp.eq.s32.totalorder %s251, 0
      %s254 = sadd.s32 %s253, 1
      %s255 = scalar_select %p252, %s253, %s254
      %p258 = pneg %p252
      %p259 = scmp.eq.s32.totalorder %s23, 3
      %p260 = por %p258, %p259
      %p261 = scmp.ne.s32.totalorder %s253, %s256
      %p262 = scmp.eq.s32.totalorder %s23, 0
      %p263 = por %p261, %p262
      %p264 = scmp.ne.s32.totalorder %s253, %s256
      %p265 = scmp.eq.s32.totalorder %s28, 3
      %p266 = por %p264, %p265
      %p267 = scmp.ne.s32.totalorder %s256, %s257
      %p268 = scmp.eq.s32.totalorder %s28, 0
      %p269 = por %p267, %p268
      %p270 = scmp.ne.s32.totalorder %s256, %s257
      %p271 = scmp.eq.s32.totalorder %s29, 3
      %p272 = por %p270, %p271
      %p274 = scmp.ne.s32.totalorder %s257, %s273
      %p275 = scmp.eq.s32.totalorder %s29, 0
      %p276 = por %p274, %p275
      %s277 = ssub.s32 %s31, %s38
      %p278 = scmp.eq.s32.totalorder %s277, 0
      %s280 = sadd.s32 %s279, 1
      %s281 = scalar_select %p278, %s279, %s280
      %p284 = pneg %p278
      %p285 = scmp.eq.s32.totalorder %s23, 3
      %p286 = por %p284, %p285
      %p287 = scmp.ne.s32.totalorder %s279, %s282
      %p288 = scmp.eq.s32.totalorder %s23, 0
      %p289 = por %p287, %p288
      %p290 = scmp.ne.s32.totalorder %s279, %s282
      %p291 = scmp.eq.s32.totalorder %s28, 3
      %p292 = por %p290, %p291
      %p293 = scmp.ne.s32.totalorder %s282, %s283
      %p294 = scmp.eq.s32.totalorder %s28, 0
      %p295 = por %p293, %p294
      %p296 = scmp.ne.s32.totalorder %s282, %s283
      %p297 = scmp.eq.s32.totalorder %s29, 3
      %p298 = por %p296, %p297
      %p300 = scmp.ne.s32.totalorder %s283, %s299
      %p301 = scmp.eq.s32.totalorder %s29, 0
      %p302 = por %p300, %p301
      %s303 = ssub.s32 %s31, %s38
      %p304 = scmp.eq.s32.totalorder %s303, 0
      %s306 = sadd.s32 %s305, 1
      %s307 = scalar_select %p304, %s305, %s306
      %p310 = pneg %p304
      %p311 = scmp.eq.s32.totalorder %s23, 3
      %p312 = por %p310, %p311
      %p313 = scmp.ne.s32.totalorder %s305, %s308
      %p314 = scmp.eq.s32.totalorder %s23, 0
      %p315 = por %p313, %p314
      %p316 = scmp.ne.s32.totalorder %s305, %s308
      %p317 = scmp.eq.s32.totalorder %s28, 3
      %p318 = por %p316, %p317
      %p319 = scmp.ne.s32.totalorder %s308, %s309
      %p320 = scmp.eq.s32.totalorder %s28, 0
      %p321 = por %p319, %p320
      %p322 = scmp.ne.s32.totalorder %s308, %s309
      %p323 = scmp.eq.s32.totalorder %s29, 3
      %p324 = por %p322, %p323
      %p326 = scmp.ne.s32.totalorder %s309, %s325
      %p327 = scmp.eq.s32.totalorder %s29, 0
      %p328 = por %p326, %p327
      %s329 = ssub.s32 %s31, %s38
      %p330 = scmp.eq.s32.totalorder %s329, 0
      %s332 = sadd.s32 %s331, 1
      %s333 = scalar_select %p330, %s331, %s332
      %p336 = pneg %p330
      %p337 = scmp.eq.s32.totalorder %s23, 3
      %p338 = por %p336, %p337
      %p339 = scmp.ne.s32.totalorder %s331, %s334
      %p340 = scmp.eq.s32.totalorder %s23, 0
      %p341 = por %p339, %p340
      %p342 = scmp.ne.s32.totalorder %s331, %s334
      %p343 = scmp.eq.s32.totalorder %s28, 3
      %p344 = por %p342, %p343
      %p345 = scmp.ne.s32.totalorder %s334, %s335
      %p346 = scmp.eq.s32.totalorder %s28, 0
      %p347 = por %p345, %p346
      %p348 = scmp.ne.s32.totalorder %s334, %s335
      %p349 = scmp.eq.s32.totalorder %s29, 3
      %p350 = por %p348, %p349
      %p352 = scmp.ne.s32.totalorder %s335, %s351
      %p353 = scmp.eq.s32.totalorder %s29, 0
      %p354 = por %p352, %p353
      %s355 = ssub.s32 %s31, %s38
      %p356 = scmp.eq.s32.totalorder %s355, 0
      %s358 = sadd.s32 %s357, 1
      %s359 = scalar_select %p356, %s357, %s358
      %p362 = pneg %p356
      %p363 = scmp.eq.s32.totalorder %s23, 3
      %p364 = por %p362, %p363
      %p365 = scmp.ne.s32.totalorder %s357, %s360
      %p366 = scmp.eq.s32.totalorder %s23, 0
      %p367 = por %p365, %p366
      %p368 = scmp.ne.s32.totalorder %s357, %s360
      %p369 = scmp.eq.s32.totalorder %s28, 3
      %p370 = por %p368, %p369
      %p371 = scmp.ne.s32.totalorder %s360, %s361
      %p372 = scmp.eq.s32.totalorder %s28, 0
      %p373 = por %p371, %p372
      %p374 = scmp.ne.s32.totalorder %s360, %s361
      %p375 = scmp.eq.s32.totalorder %s29, 3
      %p376 = por %p374, %p375
      %p378 = scmp.ne.s32.totalorder %s361, %s377
      %p379 = scmp.eq.s32.totalorder %s29, 0
      %p380 = por %p378, %p379
      %s381 = ssub.s32 %s30, %s42
      %p382 = scmp.eq.s32.totalorder %s381, 0
      %s384 = sadd.s32 %s383, 1
      %s385 = scalar_select %p382, %s383, %s384
      %p388 = pneg %p382
      %p389 = scmp.eq.s32.totalorder %s23, 3
      %p390 = por %p388, %p389
      %p391 = scmp.ne.s32.totalorder %s383, %s386
      %p392 = scmp.eq.s32.totalorder %s23, 0
      %p393 = por %p391, %p392
      %p394 = scmp.ne.s32.totalorder %s383, %s386
      %p395 = scmp.eq.s32.totalorder %s28, 3
      %p396 = por %p394, %p395
      %p397 = scmp.ne.s32.totalorder %s386, %s387
      %p398 = scmp.eq.s32.totalorder %s28, 0
      %p399 = por %p397, %p398
      %p400 = scmp.ne.s32.totalorder %s386, %s387
      %p401 = scmp.eq.s32.totalorder %s29, 3
      %p402 = por %p400, %p401
      %p404 = scmp.ne.s32.totalorder %s387, %s403
      %p405 = scmp.eq.s32.totalorder %s29, 0
      %p406 = por %p404, %p405
      %p407 = scmp.le.s32.totalorder 1, %s23
      %p408 = scmp.lt.s32.totalorder %s23, 5
      %p409 = pnand %p407, %p408
      %p410 = pneg %p409
      // Predicated region
      $region9: #{tpu_custom_call.1} parent=5 // pred_check
        _
      $region10: #{tpu_custom_call.1} parent=5 // pred_check_branch
        %412 = sbr.rel (%p409) target = $region12
      $region11: #{tpu_custom_call.1} parent=5 // pred_region
        %s413 = ssub.s32 %s23, 1
      $region12: #{tpu_custom_call.1} parent=5 // pred_fallthru
        _
      %p414 = scmp.lt.s32.totalorder %s23, 4
      // Predicated region
      $region13: #{tpu_custom_call.1} parent=5 // pred_check
        %p415 = pneg %p414
      $region14: #{tpu_custom_call.1} parent=5 // pred_check_branch
        %417 = sbr.rel (%p415) target = $region16
      $region15: #{tpu_custom_call.1} parent=5 // pred_region
        // Predicated region
        $region17: #{tpu_custom_call.1} parent=15 // pred_check
          %p418 = pneg %p55
        $region18: #{tpu_custom_call.1} parent=15 // pred_check_branch
          %420 = sbr.rel (%p418) target = $region20
        $region19: #{tpu_custom_call.1} parent=15 // pred_region
          %p421 = scmp.lt.s32.totalorder %s30, 1
          %s422 = scalar_select %p421, %s30, 1
          %s423 = smul.addr %s422, 8
          %s424 = scalar_lea.vmem %s1, %s423
        $region20: #{tpu_custom_call.1} parent=15 // pred_fallthru
          _
        // Predicated region
        $region21: #{tpu_custom_call.1} parent=15 // pred_check
          %p425 = pneg %p81
        $region22: #{tpu_custom_call.1} parent=15 // pred_check_branch
          %427 = sbr.rel (%p425) target = $region24
        $region23: #{tpu_custom_call.1} parent=15 // pred_region
          %p428 = scmp.lt.s32.totalorder %s31, 1
          %s429 = scalar_select %p428, %s31, 1
          %s430 = scalar_lea.vmem %s2, %s429
        $region24: #{tpu_custom_call.1} parent=15 // pred_fallthru
          _
        // Predicated region
        $region25: #{tpu_custom_call.1} parent=15 // pred_check
          %p431 = pneg %p107
        $region26: #{tpu_custom_call.1} parent=15 // pred_check_branch
          %433 = sbr.rel (%p431) target = $region28
        $region27: #{tpu_custom_call.1} parent=15 // pred_region
          %p434 = scmp.lt.s32.totalorder %s31, 1
          %s435 = scalar_select %p434, %s31, 1
          %s436 = scalar_lea.vmem %s3, %s435
        $region28: #{tpu_custom_call.1} parent=15 // pred_fallthru
          _
        // Predicated region
        $region29: #{tpu_custom_call.1} parent=15 // pred_check
          %p437 = pneg %p133
        $region30: #{tpu_custom_call.1} parent=15 // pred_check_branch
          %439 = sbr.rel (%p437) target = $region32
        $region31: #{tpu_custom_call.1} parent=15 // pred_region
          %p440 = scmp.lt.s32.totalorder %s31, 1
          %s441 = scalar_select %p440, %s31, 1
          %s442 = smul.addr %s441, 4
          %s443 = smul.addr %s442, 4
          %s444 = scalar_lea.vmem %s4, %s443
        $region32: #{tpu_custom_call.1} parent=15 // pred_fallthru
          _
        // Predicated region
        $region33: #{tpu_custom_call.1} parent=15 // pred_check
          %p445 = pneg %p159
        $region34: #{tpu_custom_call.1} parent=15 // pred_check_branch
          %447 = sbr.rel (%p445) target = $region36
        $region35: #{tpu_custom_call.1} parent=15 // pred_region
          %p448 = scmp.lt.s32.totalorder %s31, 1
          %s449 = scalar_select %p448, %s31, 1
          %s450 = scalar_lea.vmem %s5, %s449
        $region36: #{tpu_custom_call.1} parent=15 // pred_fallthru
          _
        // Predicated region
        $region37: #{tpu_custom_call.1} parent=15 // pred_check
          %p451 = pneg %p185
        $region38: #{tpu_custom_call.1} parent=15 // pred_check_branch
          %453 = sbr.rel (%p451) target = $region40
        $region39: #{tpu_custom_call.1} parent=15 // pred_region
          %p454 = scmp.lt.s32.totalorder %s31, 1
          %s455 = scalar_select %p454, %s31, 1
          %s456 = smul.addr %s455, 4
          %s457 = smul.addr %s456, 4
          %s458 = scalar_lea.vmem %s6, %s457
        $region40: #{tpu_custom_call.1} parent=15 // pred_fallthru
          _
        // Predicated region
        $region41: #{tpu_custom_call.1} parent=15 // pred_check
          %p459 = pneg %p211
        $region42: #{tpu_custom_call.1} parent=15 // pred_check_branch
          %461 = sbr.rel (%p459) target = $region44
        $region43: #{tpu_custom_call.1} parent=15 // pred_region
          %p462 = scmp.lt.s32.totalorder %s31, 1
          %s463 = scalar_select %p462, %s31, 1
          %s464 = scalar_lea.vmem %s7, %s463
        $region44: #{tpu_custom_call.1} parent=15 // pred_fallthru
          _
        // Predicated region
        $region45: #{tpu_custom_call.1} parent=15 // pred_check
          %p465 = pneg %p237
        $region46: #{tpu_custom_call.1} parent=15 // pred_check_branch
          %467 = sbr.rel (%p465) target = $region48
        $region47: #{tpu_custom_call.1} parent=15 // pred_region
          %p468 = scmp.lt.s32.totalorder %s31, 1
          %s469 = scalar_select %p468, %s31, 1
          %s470 = scalar_lea.vmem %s8, %s469
        $region48: #{tpu_custom_call.1} parent=15 // pred_fallthru
          _
        // Predicated region
        $region49: #{tpu_custom_call.1} parent=15 // pred_check
          %p471 = pneg %p263
        $region50: #{tpu_custom_call.1} parent=15 // pred_check_branch
          %473 = sbr.rel (%p471) target = $region52
        $region51: #{tpu_custom_call.1} parent=15 // pred_region
          %p474 = scmp.lt.s32.totalorder %s31, 1
          %s475 = scalar_select %p474, %s31, 1
          %s476 = scalar_lea.vmem %s9, %s475
        $region52: #{tpu_custom_call.1} parent=15 // pred_fallthru
          _
        // Predicated region
        $region53: #{tpu_custom_call.1} parent=15 // pred_check
          %p477 = pneg %p289
        $region54: #{tpu_custom_call.1} parent=15 // pred_check_branch
          %479 = sbr.rel (%p477) target = $region56
        $region55: #{tpu_custom_call.1} parent=15 // pred_region
          %p480 = scmp.lt.s32.totalorder %s31, 1
          %s481 = scalar_select %p480, %s31, 1
          %s482 = smul.addr %s481, 4
          %s483 = smul.addr %s482, 4
          %s484 = scalar_lea.vmem %s10, %s483
        $region56: #{tpu_custom_call.1} parent=15 // pred_fallthru
          _
        // Predicated region
        $region57: #{tpu_custom_call.1} parent=15 // pred_check
          %p485 = pneg %p315
        $region58: #{tpu_custom_call.1} parent=15 // pred_check_branch
          %487 = sbr.rel (%p485) target = $region60
        $region59: #{tpu_custom_call.1} parent=15 // pred_region
          %p488 = scmp.lt.s32.totalorder %s31, 1
          %s489 = scalar_select %p488, %s31, 1
          %s490 = scalar_lea.vmem %s11, %s489
        $region60: #{tpu_custom_call.1} parent=15 // pred_fallthru
          _
        // Predicated region
        $region61: #{tpu_custom_call.1} parent=15 // pred_check
          %p491 = pneg %p341
        $region62: #{tpu_custom_call.1} parent=15 // pred_check_branch
          %493 = sbr.rel (%p491) target = $region64
        $region63: #{tpu_custom_call.1} parent=15 // pred_region
          %p494 = scmp.lt.s32.totalorder %s31, 1
          %s495 = scalar_select %p494, %s31, 1
          %s496 = smul.addr %s495, 16
          %s497 = smul.addr %s496, 4
          %s498 = scalar_lea.vmem %s12, %s497
        $region64: #{tpu_custom_call.1} parent=15 // pred_fallthru
          _
        // Predicated region
        $region65: #{tpu_custom_call.1} parent=15 // pred_check
          %p499 = pneg %p367
        $region66: #{tpu_custom_call.1} parent=15 // pred_check_branch
          %501 = sbr.rel (%p499) target = $region68
        $region67: #{tpu_custom_call.1} parent=15 // pred_region
          %p502 = scmp.lt.s32.totalorder %s31, 1
          %s503 = scalar_select %p502, %s31, 1
          %s504 = scalar_lea.vmem %s13, %s503
        $region68: #{tpu_custom_call.1} parent=15 // pred_fallthru
          _
      $region16: #{tpu_custom_call.1} parent=5 // pred_fallthru
        _
      %p505 = scmp.le.s32.totalorder 1, %s23
      %p506 = scmp.lt.s32.totalorder %s23, 5
      %p507 = pnand %p505, %p506
      %p508 = pneg %p507
      // Predicated region
      $region69: #{tpu_custom_call.1} parent=5 // pred_check
        _
      $region70: #{tpu_custom_call.1} parent=5 // pred_check_branch
        %510 = sbr.rel (%p507) target = $region72
      $region71: #{tpu_custom_call.1} parent=5 // pred_region
        %s511 = ssub.s32 %s23, 1
        %p512 = scmp.lt.s32.totalorder %s32, 1
        %s513 = scalar_select %p512, %s32, 1
        %s514 = smul.addr %s513, 8
        %s515 = scalar_lea.vmem %s1, %s514
        %p516 = pneg %p61
        %p517 = pneg %p58
        %p518 = scmp.lt.s32.totalorder %s33, 1
        %s519 = scalar_select %p518, %s33, 1
        %s520 = scalar_lea.vmem %s2, %s519
        %p521 = pneg %p87
        %p522 = pneg %p84
        %p523 = scmp.lt.s32.totalorder %s33, 1
        %s524 = scalar_select %p523, %s33, 1
        %s525 = scalar_lea.vmem %s3, %s524
        %p526 = pneg %p113
        %p527 = pneg %p110
        %p528 = scmp.lt.s32.totalorder %s33, 1
        %s529 = scalar_select %p528, %s33, 1
        %s530 = smul.addr %s529, 4
        %s531 = smul.addr %s530, 4
        %s532 = scalar_lea.vmem %s4, %s531
        %p533 = pneg %p139
        %p534 = pneg %p136
        %p535 = scmp.lt.s32.totalorder %s33, 1
        %s536 = scalar_select %p535, %s33, 1
        %s537 = scalar_lea.vmem %s5, %s536
        %p538 = pneg %p165
        %p539 = pneg %p162
        %p540 = scmp.lt.s32.totalorder %s33, 1
        %s541 = scalar_select %p540, %s33, 1
        %s542 = smul.addr %s541, 4
        %s543 = smul.addr %s542, 4
        %s544 = scalar_lea.vmem %s6, %s543
        %p545 = pneg %p191
        %p546 = pneg %p188
        %p547 = scmp.lt.s32.totalorder %s33, 1
        %s548 = scalar_select %p547, %s33, 1
        %s549 = scalar_lea.vmem %s7, %s548
        %p550 = pneg %p217
        %p551 = pneg %p214
        %p552 = scmp.lt.s32.totalorder %s33, 1
        %s553 = scalar_select %p552, %s33, 1
        %s554 = scalar_lea.vmem %s8, %s553
        %p555 = pneg %p243
        %p556 = pneg %p240
        %p557 = scmp.lt.s32.totalorder %s33, 1
        %s558 = scalar_select %p557, %s33, 1
        %s559 = scalar_lea.vmem %s9, %s558
        %p560 = pneg %p269
        %p561 = pneg %p266
        %p562 = scmp.lt.s32.totalorder %s33, 1
        %s563 = scalar_select %p562, %s33, 1
        %s564 = smul.addr %s563, 4
        %s565 = smul.addr %s564, 4
        %s566 = scalar_lea.vmem %s10, %s565
        %p567 = pneg %p295
        %p568 = pneg %p292
        %p569 = scmp.lt.s32.totalorder %s33, 1
        %s570 = scalar_select %p569, %s33, 1
        %s571 = scalar_lea.vmem %s11, %s570
        %p572 = pneg %p321
        %p573 = pneg %p318
        %p574 = scmp.lt.s32.totalorder %s33, 1
        %s575 = scalar_select %p574, %s33, 1
        %s576 = smul.addr %s575, 16
        %s577 = smul.addr %s576, 4
        %s578 = scalar_lea.vmem %s12, %s577
        %p579 = pneg %p347
        %p580 = pneg %p344
        %p581 = scmp.lt.s32.totalorder %s33, 1
        %s582 = scalar_select %p581, %s33, 1
        %s583 = scalar_lea.vmem %s13, %s582
        %p584 = pneg %p373
        %p585 = pneg %p370
        %p586 = pneg %p399
        %p587 = pneg %p396
        %s588 = sand.u32 %s386, 1
        %s589 = scalar_lea.sflag [#allocation5], %s588
        %s590 = sand.u32 %s386, 1
        %s591 = smul.addr %s590, 8
        %s592 = scalar_lea.vmem [#allocation4], %s591
        %p593 = scmp.lt.s32.totalorder %s32, 1
        %s594 = scalar_select %p593, %s32, 1
        %s595 = smul.addr %s594, 8
        %s596 = scalar_lea.vmem %s1, %s595
        %p597 = scmp.lt.s32.totalorder %s33, 1
        %s598 = scalar_select %p597, %s33, 1
        %s599 = scalar_lea.vmem %s2, %s598
        %p600 = scmp.lt.s32.totalorder %s33, 1
        %s601 = scalar_select %p600, %s33, 1
        %s602 = scalar_lea.vmem %s3, %s601
        %p603 = scmp.lt.s32.totalorder %s33, 1
        %s604 = scalar_select %p603, %s33, 1
        %s605 = smul.addr %s604, 4
        %s606 = smul.addr %s605, 4
        %s607 = scalar_lea.vmem %s4, %s606
        %p608 = scmp.lt.s32.totalorder %s33, 1
        %s609 = scalar_select %p608, %s33, 1
        %s610 = scalar_lea.vmem %s5, %s609
        %p611 = scmp.lt.s32.totalorder %s33, 1
        %s612 = scalar_select %p611, %s33, 1
        %s613 = smul.addr %s612, 4
        %s614 = smul.addr %s613, 4
        %s615 = scalar_lea.vmem %s6, %s614
        %p616 = scmp.lt.s32.totalorder %s33, 1
        %s617 = scalar_select %p616, %s33, 1
        %s618 = scalar_lea.vmem %s7, %s617
        %p619 = scmp.lt.s32.totalorder %s33, 1
        %s620 = scalar_select %p619, %s33, 1
        %s621 = scalar_lea.vmem %s8, %s620
        %p622 = scmp.lt.s32.totalorder %s33, 1
        %s623 = scalar_select %p622, %s33, 1
        %s624 = scalar_lea.vmem %s9, %s623
        %p625 = scmp.lt.s32.totalorder %s33, 1
        %s626 = scalar_select %p625, %s33, 1
        %s627 = smul.addr %s626, 4
        %s628 = smul.addr %s627, 4
        %s629 = scalar_lea.vmem %s10, %s628
        %p630 = scmp.lt.s32.totalorder %s33, 1
        %s631 = scalar_select %p630, %s33, 1
        %s632 = scalar_lea.vmem %s11, %s631
        %p633 = scmp.lt.s32.totalorder %s33, 1
        %s634 = scalar_select %p633, %s33, 1
        %s635 = smul.addr %s634, 16
        %s636 = smul.addr %s635, 4
        %s637 = scalar_lea.vmem %s12, %s636
        %p638 = scmp.lt.s32.totalorder %s33, 1
        %s639 = scalar_select %p638, %s33, 1
        %s640 = scalar_lea.vmem %s13, %s639
        %p642 = scmp.eq.s32.totalorder %s33, 0
        // Predicated region
        $region73: #{tpu_custom_call.1} parent=71 // pred_check
          %p643 = pneg %p642
        $region74: #{tpu_custom_call.1} parent=71 // pred_check_branch
          %645 = sbr.rel (%p643) target = $region76
        $region75: #{tpu_custom_call.1} parent=71 // pred_region
          %s646 = smul.u32 %s32, 8
          %s647 = scalar_lea.vmem %s0, %s646
          // Predicated region
          $region77: #{tpu_custom_call.1} parent=75 // pred_check
            _
          $region78: #{tpu_custom_call.1} parent=75 // pred_check_branch
            %649 = sbr.rel (0) target = $region80
          $region79: #{tpu_custom_call.1} parent=75 // pred_region
            // Predicated region
            $region92: #{tpu_custom_call.1} parent=79 // pred_check
              _
            $region93: #{tpu_custom_call.1} parent=79 // pred_check_branch
              %665 = sbr.rel (0) target = $region95
            $region94: #{tpu_custom_call.1} parent=79 // pred_region
              loop: start=0, step=1, limit=1
              $region96: #{tpu_custom_call.1} parent=94 // loop_pre_header
                _
              $region97: #{tpu_custom_call.1} parent=94 // loop_header
                %s667 = sphi 0, %s671
                %p668 = scmp.ge.s32.totalorder %s667, 1
                %s672 = sphi %s647, %s647
                %s673 = sphi [#allocation2], [#allocation2]
              $region98: #{tpu_custom_call.1} parent=94 // loop_header_branch
                %670 = sbr.rel (%p668) target = $region102
              $region99: #{tpu_custom_call.1} parent=94 // loop_body
                %v674 = vld [vmem:[%s672] sm:$0xff]
                %675 = vst [vmem:[%s673] sm:$0xff] %v674
              $region100: #{tpu_custom_call.1} parent=94 // loop_footer
                %s671 = sadd.s32 1, %s667
              $region101: #{tpu_custom_call.1} parent=94 // loop_footer_branch
                %666 = sbr.rel target = $region97
              $region102: #{tpu_custom_call.1} parent=94 // loop_exit
                _
            $region95: #{tpu_custom_call.1} parent=79 // pred_fallthru
              _
            // Predicated region
            $region103: #{tpu_custom_call.1} parent=79 // pred_check
              _
            $region104: #{tpu_custom_call.1} parent=79 // pred_check_branch
              %677 = sbr.rel target = $region106
            $region105: #{tpu_custom_call.1} parent=79 // pred_region
              _
            $region106: #{tpu_custom_call.1} parent=79 // pred_fallthru
              _
          $region80: #{tpu_custom_call.1} parent=75 // pred_fallthru
            _
          // Predicated region
          $region81: #{tpu_custom_call.1} parent=75 // pred_check
            _
          $region82: #{tpu_custom_call.1} parent=75 // pred_check_branch
            %651 = sbr.rel target = $region84
          $region83: #{tpu_custom_call.1} parent=75 // pred_region
            %s653 = ssub.s32 256, 1
            loop: start=0, step=1, limit=1
            $region85: #{tpu_custom_call.1} parent=83 // loop_pre_header
              _
            $region86: #{tpu_custom_call.1} parent=83 // loop_header
              %s655 = sphi 0, %s659
              %p656 = scmp.ge.s32.totalorder %s655, 1
              %s660 = sphi %s647, %s647
              %s661 = sphi [#allocation2], [#allocation2]
            $region87: #{tpu_custom_call.1} parent=83 // loop_header_branch
              %658 = sbr.rel (%p656) target = $region91
            $region88: #{tpu_custom_call.1} parent=83 // loop_body
              %v662 = vld [vmem:[%s660] sm:%s653]
              %663 = vst [vmem:[%s661] sm:%s653] %v662
            $region89: #{tpu_custom_call.1} parent=83 // loop_footer
              %s659 = sadd.s32 1, %s655
            $region90: #{tpu_custom_call.1} parent=83 // loop_footer_branch
              %654 = sbr.rel target = $region86
            $region91: #{tpu_custom_call.1} parent=83 // loop_exit
              _
          $region84: #{tpu_custom_call.1} parent=75 // pred_fallthru
            _
          // Predicated region
          $region107: #{tpu_custom_call.1} parent=75 // pred_check
            _
          $region108: #{tpu_custom_call.1} parent=75 // pred_check_branch
            %680 = sbr.rel (0) target = $region110
          $region109: #{tpu_custom_call.1} parent=75 // pred_region
            %681 = vsyncadd [#allocation3], 128
          $region110: #{tpu_custom_call.1} parent=75 // pred_fallthru
            _
          %s682 = smul.u32 8, 1
          %s683 = sshll.u32 %s682, 4
          %684 = dma.done [#allocation3], %s683
        $region76: #{tpu_custom_call.1} parent=71 // pred_fallthru
          _
        %v685 = vld [vmem:[#allocation2] sm:$0xff]
        %v686 = vld [vmem:[%s599] sm:$0x1]
        %v687 = vld [vmem:[%s602] sm:$0x1]
        %vm688 = vcmask 261120
        %v689 = vsel %vm688, %v685, 0.0
        %690 = vadd.xlane.f32.xlu0 %v689
        %v691 = vpop.xlane.xlu0 %690
        %v692 = vrcp.pop 32.0
        %v693 = vmul.f32 32.0, %v692
        %v694 = vsub.f32 1.0, %v693
        %v695 = vmul.f32 %v692, %v694
        %v696 = vadd.f32 %v692, %v695
        %vm697 = vweird.f32 %v692
        %v698 = vsel %vm697, %v692, %v696
        %v699 = vmul.f32 %v691, %v698
        %v700 = vsub.f32 %v685, %v699
        %v701 = vmul.f32 %v700, %v700
        %v702 = vsel %vm688, %v701, 0.0
        %703 = vadd.xlane.f32.xlu0 %v702
        %v704 = vpop.xlane.xlu0 %703
        %v705 = vmul.f32 %v704, %v698
        %v706 = vadd.f32 %v705, 1e-05
        %v707 = vrsqrt.pop %v706
        %v708 = vmul.f32 %v707, %v706
        %v709 = vmul.f32 %v708, %v707
        %v710 = vmul.f32 0.5, %v709
        %v711 = vsub.f32 1.5, %v710
        %v712 = vmul.f32 %v707, %v711
        %vm713 = vweird.f32 %v706
        %vm714 = vweird.f32 %v707
        %vm715 = vmor %vm713, %vm714
        %v716 = vsel %vm715, %v707, %v712
        %v717 = vmul.f32 %v700, %v716
        %v719 = vperm.slane %v686, 0
        %v721 = vmul.f32 %v717, %v719
        %v723 = vperm.slane %v687, 0
        %v725 = vadd.f32 %v721, %v723
        %v726 = vld [vmem:[%s607] sm:$0xf]
        %v727 = vld [vmem:[%s607 + $0x4] sm:$0xf]
        %v728 = vld [vmem:[%s607 + $0x8] sm:$0xf]
        %v729 = vld [vmem:[%s607 + $0xc] sm:$0xf]
        %v730 = vpack.c.bf16 %v725, %v725
        %v731 = vld [vmem:[%s610] sm:$0x1]
        %v733 = vperm.slane %v731, 0
        %v739 = vunpack.c.l.b16 %v726
        %v740 = vunpack.c.l.b16 %v727
        %v741 = vunpack.c.l.b16 %v728
        %v742 = vunpack.c.l.b16 %v729
        %v743 = vpack.c.b16 %v740, %v739
        %v744 = vpack.c.b16 %v742, %v741
        %v748 = vsel %vm688, %v730, 0
        %750 = vmatpush.bf16.msra.mxu0 0
        %751 = vmatpush.bf16.msra.mxu0 0
        %752 = vmatpush.bf16.msra.mxu0 0
        %753 = vmatpush.bf16.msra.mxu0 0
        %754 = vmatpush.bf16.msra.mxu0 0
        %755 = vmatpush.bf16.msra.mxu0 0
        %756 = vmatpush.bf16.msra.mxu0 %v744
        %757 = vmatpush.bf16.msra.mxu0 %v743
        %758 = vmatmul.bf16.gmra.mxu0 %v748
        %v759 = vpop.f32.mrf.mxu0
        %v760 = vadd.f32 %v733, %v759
        %v761 = vpop.f32.mrf.mxu0
        %762 = vdwg.mxu0
        %v763 = vld [vmem:[%s596] sm:$0xff]
        %v764 = vpack.c.bf16 %v760, %v760
        %v766 = vunpack.c.l.b16 %v764
        %v767 = vpack.c.b16 %v766, %v766
        %768 = vrot.lane.b32.xlu0 %v767, 96
        %v769 = vpop.permute.xlu0 %768
        %vm770 = vcmask 64512
        %v772 = vsel %vm770, %v764, 0
        %v775 = vsel %vm770, %v769, 0
        %777 = vmatpush.bf16.xpose.msra.mxu0 0
        %778 = vmatpush.bf16.xpose.msra.mxu0 0
        %779 = vmatpush.bf16.xpose.msra.mxu0 0
        %780 = vmatpush.bf16.xpose.msra.mxu0 0
        %781 = vmatpush.bf16.xpose.msra.mxu0 0
        %782 = vmatpush.bf16.xpose.msra.mxu0 0
        %783 = vmatpush.bf16.xpose.msra.mxu0 0
        %784 = vmatpush.bf16.xpose.msra.mxu0 %v775
        %785 = vmatmul.bf16.gmra.mxu0 %v772
        %v786 = vpop.f32.mrf.mxu0
        %v787 = vadd.f32 0.0, %v786
        %v788 = vpop.f32.mrf.mxu0
        %789 = vdwg.mxu0
        %v790 = vmul.f32 %v787, 0.35355338
        %v791 = vadd.f32 %v790, %v763
        %v792 = vsel %vm770, %v791, -inf
        %793 = vmax.xlane.f32.xlu0 %v792
        %v794 = vpop.xlane.xlu0 %793
        %v795 = vsub.f32 %v791, %v794
        %v796 = vmul.f32 %v795, 1.442695
        %v797 = vpow.pop %v796
        %v798 = vsel %vm770, %v797, 0.0
        %799 = vadd.xlane.f32.xlu0 %v798
        %v800 = vpop.xlane.xlu0 %799
        %v801 = vrcp.pop %v800
        %v802 = vmul.f32 %v800, %v801
        %v803 = vsub.f32 1.0, %v802
        %v804 = vmul.f32 %v801, %v803
        %v805 = vadd.f32 %v801, %v804
        %vm806 = vweird.f32 %v800
        %vm807 = vweird.f32 %v801
        %vm808 = vmor %vm806, %vm807
        %v809 = vsel %vm808, %v801, %v805
        %v810 = vand.u32 2147483647, %v800
        %vm811 = vcmp.eq.f32.partialorder %v810, 8.507059e+37
        %v812 = vand.u32 %v800, 2147483648
        %v813 = vor.u32 1.1754944e-38, %v812
        %v814 = vsel %vm811, %v813, %v809
        %v815 = vmul.f32 %v797, %v814
        %v816 = vpack.c.bf16 %v815, %v815
        %817 = vrot.lane.b32.xlu0 %v767, 64
        %v818 = vpop.permute.xlu0 %817
        %v820 = vsel %vm770, %v816, 0
        %vm822 = vcmask 1043456
        %v824 = vsel %vm822, %v818, 0
        %826 = vmatpush.bf16.msra.mxu0 0
        %827 = vmatpush.bf16.msra.mxu0 0
        %828 = vmatpush.bf16.msra.mxu0 0
        %829 = vmatpush.bf16.msra.mxu0 0
        %830 = vmatpush.bf16.msra.mxu0 0
        %831 = vmatpush.bf16.msra.mxu0 0
        %832 = vmatpush.bf16.msra.mxu0 0
        %833 = vmatpush.bf16.msra.mxu0 %v824
        %834 = vmatmul.bf16.gmra.mxu0 %v820
        %v835 = vpop.f32.mrf.mxu0
        %v836 = vadd.f32 0.0, %v835
        %v837 = vpop.f32.mrf.mxu0
        %838 = vdwg.mxu0
        %v839 = vld [vmem:[%s615] sm:$0xf]
        %v840 = vpack.c.bf16 %v836, %v836
        %841 = vrot.lane.b32.xlu0 %v767, 120
        %v842 = vpop.permute.xlu0 %841
        %843 = vrot.lane.b32.xlu0 %v767, 88
        %v844 = vpop.permute.xlu0 %843
        %v846 = vsel %vm770, %v842, 0
        %v849 = vsel %vm770, %v844, 0
        %851 = vmatpush.bf16.xpose.msra.mxu0 0
        %852 = vmatpush.bf16.xpose.msra.mxu0 0
        %853 = vmatpush.bf16.xpose.msra.mxu0 0
        %854 = vmatpush.bf16.xpose.msra.mxu0 0
        %855 = vmatpush.bf16.xpose.msra.mxu0 0
        %856 = vmatpush.bf16.xpose.msra.mxu0 0
        %857 = vmatpush.bf16.xpose.msra.mxu0 0
        %858 = vmatpush.bf16.xpose.msra.mxu0 %v849
        %859 = vmatmul.bf16.gmra.mxu0 %v846
        %v860 = vpop.f32.mrf.mxu0
        %v861 = vadd.f32 0.0, %v860
        %v862 = vpop.f32.mrf.mxu0
        %863 = vdwg.mxu0
        %v864 = vmul.f32 %v861, 0.35355338
        %v865 = vadd.f32 %v864, %v763
        %v866 = vsel %vm770, %v865, -inf
        %867 = vmax.xlane.f32.xlu0 %v866
        %v868 = vpop.xlane.xlu0 %867
        %v869 = vsub.f32 %v865, %v868
        %v870 = vmul.f32 %v869, 1.442695
        %v871 = vpow.pop %v870
        %v872 = vsel %vm770, %v871, 0.0
        %873 = vadd.xlane.f32.xlu0 %v872
        %v874 = vpop.xlane.xlu0 %873
        %v875 = vrcp.pop %v874
        %v876 = vmul.f32 %v874, %v875
        %v877 = vsub.f32 1.0, %v876
        %v878 = vmul.f32 %v875, %v877
        %v879 = vadd.f32 %v875, %v878
        %vm880 = vweird.f32 %v874
        %vm881 = vweird.f32 %v875
        %vm882 = vmor %vm880, %vm881
        %v883 = vsel %vm882, %v875, %v879
        %v884 = vand.u32 2147483647, %v874
        %vm885 = vcmp.eq.f32.partialorder %v884, 8.507059e+37
        %v886 = vand.u32 %v874, 2147483648
        %v887 = vor.u32 1.1754944e-38, %v886
        %v888 = vsel %vm885, %v887, %v883
        %v889 = vmul.f32 %v871, %v888
        %v890 = vpack.c.bf16 %v889, %v889
        %891 = vrot.lane.b32.xlu0 %v767, 56
        %v892 = vpop.permute.xlu0 %891
        %v894 = vsel %vm770, %v890, 0
        %v897 = vsel %vm822, %v892, 0
        %899 = vmatpush.bf16.msra.mxu0 0
        %900 = vmatpush.bf16.msra.mxu0 0
        %901 = vmatpush.bf16.msra.mxu0 0
        %902 = vmatpush.bf16.msra.mxu0 0
        %903 = vmatpush.bf16.msra.mxu0 0
        %904 = vmatpush.bf16.msra.mxu0 0
        %905 = vmatpush.bf16.msra.mxu0 0
        %906 = vmatpush.bf16.msra.mxu0 %v897
        %907 = vmatmul.bf16.gmra.mxu0 %v894
        %v908 = vpop.f32.mrf.mxu0
        %v909 = vadd.f32 0.0, %v908
        %v910 = vpop.f32.mrf.mxu0
        %911 = vdwg.mxu0
        %s912 = scalar_lea.vmem %s615, 4
        %v913 = vld [vmem:[%s912] sm:$0xf]
        %v914 = vpack.c.bf16 %v909, %v909
        %v916 = vsel %vm770, %v914, 0
        %v919 = vsel %vm822, %v913, 0
        %921 = vmatpush.bf16.msra.mxu0 0
        %922 = vmatpush.bf16.msra.mxu0 0
        %923 = vmatpush.bf16.msra.mxu0 0
        %924 = vmatpush.bf16.msra.mxu0 0
        %925 = vmatpush.bf16.msra.mxu0 0
        %926 = vmatpush.bf16.msra.mxu0 0
        %927 = vmatpush.bf16.msra.mxu0 0
        %928 = vmatpush.bf16.msra.mxu0 %v919
        %929 = vmatmul.bf16.gmra.mxu0 %v916
        %v930 = vpop.f32.mrf.mxu0
        %v931 = vadd.f32 0.0, %v930
        %v932 = vpop.f32.mrf.mxu0
        %933 = vdwg.mxu0
        %v935 = vsel %vm770, %v840, 0
        %v938 = vsel %vm822, %v839, 0
        %940 = vmatpush.bf16.msra.mxu0 0
        %941 = vmatpush.bf16.msra.mxu0 0
        %942 = vmatpush.bf16.msra.mxu0 0
        %943 = vmatpush.bf16.msra.mxu0 0
        %944 = vmatpush.bf16.msra.mxu0 0
        %945 = vmatpush.bf16.msra.mxu0 0
        %946 = vmatpush.bf16.msra.mxu0 0
        %947 = vmatpush.bf16.msra.mxu0 %v938
        %948 = vmatmul.bf16.gmra.mxu0 %v935
        %v949 = vpop.f32.mrf.mxu0
        %v950 = vadd.f32 %v931, %v949
        %v951 = vpop.f32.mrf.mxu0
        %952 = vdwg.mxu0
        %953 = vrot.lane.b32.xlu0 %v767, 112
        %v954 = vpop.permute.xlu0 %953
        %955 = vrot.lane.b32.xlu0 %v767, 80
        %v956 = vpop.permute.xlu0 %955
        %v958 = vsel %vm770, %v954, 0
        %v961 = vsel %vm770, %v956, 0
        %963 = vmatpush.bf16.xpose.msra.mxu0 0
        %964 = vmatpush.bf16.xpose.msra.mxu0 0
        %965 = vmatpush.bf16.xpose.msra.mxu0 0
        %966 = vmatpush.bf16.xpose.msra.mxu0 0
        %967 = vmatpush.bf16.xpose.msra.mxu0 0
        %968 = vmatpush.bf16.xpose.msra.mxu0 0
        %969 = vmatpush.bf16.xpose.msra.mxu0 0
        %970 = vmatpush.bf16.xpose.msra.mxu0 %v961
        %971 = vmatmul.bf16.gmra.mxu0 %v958
        %v972 = vpop.f32.mrf.mxu0
        %v973 = vadd.f32 0.0, %v972
        %v974 = vpop.f32.mrf.mxu0
        %975 = vdwg.mxu0
        %v976 = vmul.f32 %v973, 0.35355338
        %v977 = vadd.f32 %v976, %v763
        %v978 = vsel %vm770, %v977, -inf
        %979 = vmax.xlane.f32.xlu0 %v978
        %v980 = vpop.xlane.xlu0 %979
        %v981 = vsub.f32 %v977, %v980
        %v982 = vmul.f32 %v981, 1.442695
        %v983 = vpow.pop %v982
        %v984 = vsel %vm770, %v983, 0.0
        %985 = vadd.xlane.f32.xlu0 %v984
        %v986 = vpop.xlane.xlu0 %985
        %v987 = vrcp.pop %v986
        %v988 = vmul.f32 %v986, %v987
        %v989 = vsub.f32 1.0, %v988
        %v990 = vmul.f32 %v987, %v989
        %v991 = vadd.f32 %v987, %v990
        %vm992 = vweird.f32 %v986
        %vm993 = vweird.f32 %v987
        %vm994 = vmor %vm992, %vm993
        %v995 = vsel %vm994, %v987, %v991
        %v996 = vand.u32 2147483647, %v986
        %vm997 = vcmp.eq.f32.partialorder %v996, 8.507059e+37
        %v998 = vand.u32 %v986, 2147483648
        %v999 = vor.u32 1.1754944e-38, %v998
        %v1000 = vsel %vm997, %v999, %v995
        %v1001 = vmul.f32 %v983, %v1000
        %v1002 = vpack.c.bf16 %v1001, %v1001
        %1003 = vrot.lane.b32.xlu0 %v767, 48
        %v1004 = vpop.permute.xlu0 %1003
        %v1006 = vsel %vm770, %v1002, 0
        %v1009 = vsel %vm822, %v1004, 0
        %1011 = vmatpush.bf16.msra.mxu0 0
        %1012 = vmatpush.bf16.msra.mxu0 0
        %1013 = vmatpush.bf16.msra.mxu0 0
        %1014 = vmatpush.bf16.msra.mxu0 0
        %1015 = vmatpush.bf16.msra.mxu0 0
        %1016 = vmatpush.bf16.msra.mxu0 0
        %1017 = vmatpush.bf16.msra.mxu0 0
        %1018 = vmatpush.bf16.msra.mxu0 %v1009
        %1019 = vmatmul.bf16.gmra.mxu0 %v1006
        %v1020 = vpop.f32.mrf.mxu0
        %v1021 = vadd.f32 0.0, %v1020
        %v1022 = vpop.f32.mrf.mxu0
        %1023 = vdwg.mxu0
        %s1024 = scalar_lea.vmem %s615, 8
        %v1025 = vld [vmem:[%s1024] sm:$0xf]
        %v1026 = vpack.c.bf16 %v1021, %v1021
        %v1028 = vsel %vm770, %v1026, 0
        %v1031 = vsel %vm822, %v1025, 0
        %1033 = vmatpush.bf16.msra.mxu0 0
        %1034 = vmatpush.bf16.msra.mxu0 0
        %1035 = vmatpush.bf16.msra.mxu0 0
        %1036 = vmatpush.bf16.msra.mxu0 0
        %1037 = vmatpush.bf16.msra.mxu0 0
        %1038 = vmatpush.bf16.msra.mxu0 0
        %1039 = vmatpush.bf16.msra.mxu0 0
        %1040 = vmatpush.bf16.msra.mxu0 %v1031
        %1041 = vmatmul.bf16.gmra.mxu0 %v1028
        %v1042 = vpop.f32.mrf.mxu0
        %v1043 = vadd.f32 0.0, %v1042
        %v1044 = vpop.f32.mrf.mxu0
        %1045 = vdwg.mxu0
        %v1046 = vadd.f32 %v950, %v1043
        %1047 = vrot.lane.b32.xlu0 %v767, 104
        %v1048 = vpop.permute.xlu0 %1047
        %1049 = vrot.lane.b32.xlu0 %v767, 72
        %v1050 = vpop.permute.xlu0 %1049
        %v1052 = vsel %vm770, %v1048, 0
        %v1055 = vsel %vm770, %v1050, 0
        %1057 = vmatpush.bf16.xpose.msra.mxu0 0
        %1058 = vmatpush.bf16.xpose.msra.mxu0 0
        %1059 = vmatpush.bf16.xpose.msra.mxu0 0
        %1060 = vmatpush.bf16.xpose.msra.mxu0 0
        %1061 = vmatpush.bf16.xpose.msra.mxu0 0
        %1062 = vmatpush.bf16.xpose.msra.mxu0 0
        %1063 = vmatpush.bf16.xpose.msra.mxu0 0
        %1064 = vmatpush.bf16.xpose.msra.mxu0 %v1055
        %1065 = vmatmul.bf16.gmra.mxu0 %v1052
        %v1066 = vpop.f32.mrf.mxu0
        %v1067 = vadd.f32 0.0, %v1066
        %v1068 = vpop.f32.mrf.mxu0
        %1069 = vdwg.mxu0
        %v1070 = vmul.f32 %v1067, 0.35355338
        %v1071 = vadd.f32 %v1070, %v763
        %v1072 = vsel %vm770, %v1071, -inf
        %1073 = vmax.xlane.f32.xlu0 %v1072
        %v1074 = vpop.xlane.xlu0 %1073
        %v1075 = vsub.f32 %v1071, %v1074
        %v1076 = vmul.f32 %v1075, 1.442695
        %v1077 = vpow.pop %v1076
        %v1078 = vsel %vm770, %v1077, 0.0
        %1079 = vadd.xlane.f32.xlu0 %v1078
        %v1080 = vpop.xlane.xlu0 %1079
        %v1081 = vrcp.pop %v1080
        %v1082 = vmul.f32 %v1080, %v1081
        %v1083 = vsub.f32 1.0, %v1082
        %v1084 = vmul.f32 %v1081, %v1083
        %v1085 = vadd.f32 %v1081, %v1084
        %vm1086 = vweird.f32 %v1080
        %vm1087 = vweird.f32 %v1081
        %vm1088 = vmor %vm1086, %vm1087
        %v1089 = vsel %vm1088, %v1081, %v1085
        %v1090 = vand.u32 2147483647, %v1080
        %vm1091 = vcmp.eq.f32.partialorder %v1090, 8.507059e+37
        %v1092 = vand.u32 %v1080, 2147483648
        %v1093 = vor.u32 1.1754944e-38, %v1092
        %v1094 = vsel %vm1091, %v1093, %v1089
        %v1095 = vmul.f32 %v1077, %v1094
        %v1096 = vpack.c.bf16 %v1095, %v1095
        %1097 = vrot.lane.b32.xlu0 %v767, 40
        %v1098 = vpop.permute.xlu0 %1097
        %v1100 = vsel %vm770, %v1096, 0
        %v1103 = vsel %vm822, %v1098, 0
        %1105 = vmatpush.bf16.msra.mxu0 0
        %1106 = vmatpush.bf16.msra.mxu0 0
        %1107 = vmatpush.bf16.msra.mxu0 0
        %1108 = vmatpush.bf16.msra.mxu0 0
        %1109 = vmatpush.bf16.msra.mxu0 0
        %1110 = vmatpush.bf16.msra.mxu0 0
        %1111 = vmatpush.bf16.msra.mxu0 0
        %1112 = vmatpush.bf16.msra.mxu0 %v1103
        %1113 = vmatmul.bf16.gmra.mxu0 %v1100
        %v1114 = vpop.f32.mrf.mxu0
        %v1115 = vadd.f32 0.0, %v1114
        %v1116 = vpop.f32.mrf.mxu0
        %1117 = vdwg.mxu0
        %s1118 = scalar_lea.vmem %s615, 12
        %v1119 = vld [vmem:[%s1118] sm:$0xf]
        %v1120 = vpack.c.bf16 %v1115, %v1115
        %v1122 = vsel %vm770, %v1120, 0
        %v1125 = vsel %vm822, %v1119, 0
        %1127 = vmatpush.bf16.msra.mxu0 0
        %1128 = vmatpush.bf16.msra.mxu0 0
        %1129 = vmatpush.bf16.msra.mxu0 0
        %1130 = vmatpush.bf16.msra.mxu0 0
        %1131 = vmatpush.bf16.msra.mxu0 0
        %1132 = vmatpush.bf16.msra.mxu0 0
        %1133 = vmatpush.bf16.msra.mxu0 0
        %1134 = vmatpush.bf16.msra.mxu0 %v1125
        %1135 = vmatmul.bf16.gmra.mxu0 %v1122
        %v1136 = vpop.f32.mrf.mxu0
        %v1137 = vadd.f32 0.0, %v1136
        %v1138 = vpop.f32.mrf.mxu0
        %1139 = vdwg.mxu0
        %v1140 = vadd.f32 %v1046, %v1137
        %v1141 = vadd.f32 %v685, %v1140
        %v1142 = vld [vmem:[%s618] sm:$0x1]
        %v1144 = vperm.slane %v1142, 0
        %v1146 = vadd.f32 %v1141, %v1144
        %v1147 = vld [vmem:[%s621] sm:$0x1]
        %v1148 = vld [vmem:[%s624] sm:$0x1]
        %v1149 = vsel %vm688, %v1146, 0.0
        %1150 = vadd.xlane.f32.xlu0 %v1149
        %v1151 = vpop.xlane.xlu0 %1150
        %v1152 = vmul.f32 %v1151, %v698
        %v1153 = vsub.f32 %v1146, %v1152
        %v1154 = vmul.f32 %v1153, %v1153
        %v1155 = vsel %vm688, %v1154, 0.0
        %1156 = vadd.xlane.f32.xlu0 %v1155
        %v1157 = vpop.xlane.xlu0 %1156
        %v1158 = vmul.f32 %v1157, %v698
        %v1159 = vadd.f32 %v1158, 1e-05
        %v1160 = vrsqrt.pop %v1159
        %v1161 = vmul.f32 %v1160, %v1159
        %v1162 = vmul.f32 %v1161, %v1160
        %v1163 = vmul.f32 0.5, %v1162
        %v1164 = vsub.f32 1.5, %v1163
        %v1165 = vmul.f32 %v1160, %v1164
        %vm1166 = vweird.f32 %v1159
        %vm1167 = vweird.f32 %v1160
        %vm1168 = vmor %vm1166, %vm1167
        %v1169 = vsel %vm1168, %v1160, %v1165
        %v1170 = vmul.f32 %v1153, %v1169
        %v1172 = vperm.slane %v1147, 0
        %v1174 = vmul.f32 %v1170, %v1172
        %v1176 = vperm.slane %v1148, 0
        %v1178 = vadd.f32 %v1174, %v1176
        %v1179 = vld [vmem:[%s629] sm:$0xf]
        %v1180 = vld [vmem:[%s629 + $0x4] sm:$0xf]
        %v1181 = vld [vmem:[%s629 + $0x8] sm:$0xf]
        %v1182 = vld [vmem:[%s629 + $0xc] sm:$0xf]
        %v1183 = vpack.c.bf16 %v1178, %v1178
        %v1184 = vld [vmem:[%s632] sm:$0x1]
        %v1186 = vperm.slane %v1184, 0
        %v1192 = vunpack.c.l.b16 %v1179
        %v1193 = vunpack.c.l.b16 %v1180
        %v1194 = vunpack.c.l.b16 %v1181
        %v1195 = vunpack.c.l.b16 %v1182
        %v1196 = vpack.c.b16 %v1193, %v1192
        %v1197 = vpack.c.b16 %v1195, %v1194
        %v1201 = vsel %vm688, %v1183, 0
        %1203 = vmatpush.bf16.msra.mxu0 0
        %1204 = vmatpush.bf16.msra.mxu0 0
        %1205 = vmatpush.bf16.msra.mxu0 0
        %1206 = vmatpush.bf16.msra.mxu0 0
        %1207 = vmatpush.bf16.msra.mxu0 0
        %1208 = vmatpush.bf16.msra.mxu0 0
        %1209 = vmatpush.bf16.msra.mxu0 %v1197
        %1210 = vmatpush.bf16.msra.mxu0 %v1196
        %1211 = vmatmul.bf16.gmra.mxu0 %v1201
        %v1212 = vpop.f32.mrf.mxu0
        %v1213 = vadd.f32 %v1186, %v1212
        %v1214 = vpop.f32.mrf.mxu0
        %1215 = vdwg.mxu0
        %v1216 = vmul.f32 %v1213, 1.702
        %v1217 = vxor.u32 %v1216, 2147483648
        %v1218 = vmul.f32 %v1217, 1.442695
        %v1219 = vpow.pop %v1218
        %v1220 = vadd.f32 %v1219, 1.0
        %v1221 = vrcp.pop %v1220
        %v1222 = vmul.f32 %v1220, %v1221
        %v1223 = vsub.f32 1.0, %v1222
        %v1224 = vmul.f32 %v1221, %v1223
        %v1225 = vadd.f32 %v1221, %v1224
        %vm1226 = vweird.f32 %v1220
        %vm1227 = vweird.f32 %v1221
        %vm1228 = vmor %vm1226, %vm1227
        %v1229 = vsel %vm1228, %v1221, %v1225
        %v1230 = vand.u32 2147483647, %v1220
        %vm1231 = vcmp.eq.f32.partialorder %v1230, 8.507059e+37
        %v1232 = vand.u32 %v1220, 2147483648
        %v1233 = vor.u32 1.1754944e-38, %v1232
        %v1234 = vsel %vm1231, %v1233, %v1229
        %v1235 = vmul.f32 1.0, %v1234
        %v1236 = vmul.f32 %v1213, %v1235
        %v1237 = vld [vmem:[%s637] sm:$0xf]
        %v1238 = vld [vmem:[%s637 + $0x4] sm:$0xf]
        %v1239 = vld [vmem:[%s637 + $0x8] sm:$0xf]
        %v1240 = vld [vmem:[%s637 + $0xc] sm:$0xf]
        %v1241 = vld [vmem:[%s637 + $0x10] sm:$0xf]
        %v1242 = vld [vmem:[%s637 + $0x14] sm:$0xf]
        %v1243 = vld [vmem:[%s637 + $0x18] sm:$0xf]
        %v1244 = vld [vmem:[%s637 + $0x1c] sm:$0xf]
        %v1245 = vld [vmem:[%s637 + $0x20] sm:$0xf]
        %v1246 = vld [vmem:[%s637 + $0x24] sm:$0xf]
        %v1247 = vld [vmem:[%s637 + $0x28] sm:$0xf]
        %v1248 = vld [vmem:[%s637 + $0x2c] sm:$0xf]
        %v1249 = vld [vmem:[%s637 + $0x30] sm:$0xf]
        %v1250 = vld [vmem:[%s637 + $0x34] sm:$0xf]
        %v1251 = vld [vmem:[%s637 + $0x38] sm:$0xf]
        %v1252 = vld [vmem:[%s637 + $0x3c] sm:$0xf]
        %v1253 = vpack.c.bf16 %v1236, %v1236
        %v1270 = vunpack.c.l.b16 %v1237
        %v1271 = vunpack.c.l.b16 %v1238
        %v1272 = vunpack.c.l.b16 %v1239
        %v1273 = vunpack.c.l.b16 %v1240
        %v1274 = vunpack.c.l.b16 %v1241
        %v1275 = vunpack.c.l.b16 %v1242
        %v1276 = vunpack.c.l.b16 %v1243
        %v1277 = vunpack.c.l.b16 %v1244
        %v1278 = vunpack.c.l.b16 %v1245
        %v1279 = vunpack.c.l.b16 %v1246
        %v1280 = vunpack.c.l.b16 %v1247
        %v1281 = vunpack.c.l.b16 %v1248
        %v1282 = vunpack.c.l.b16 %v1249
        %v1283 = vunpack.c.l.b16 %v1250
        %v1284 = vunpack.c.l.b16 %v1251
        %v1285 = vunpack.c.l.b16 %v1252
        %v1286 = vpack.c.b16 %v1271, %v1270
        %v1287 = vpack.c.b16 %v1273, %v1272
        %v1288 = vpack.c.b16 %v1275, %v1274
        %v1289 = vpack.c.b16 %v1277, %v1276
        %v1290 = vpack.c.b16 %v1279, %v1278
        %v1291 = vpack.c.b16 %v1281, %v1280
        %v1292 = vpack.c.b16 %v1283, %v1282
        %v1293 = vpack.c.b16 %v1285, %v1284
        %1302 = vmatpush.bf16.msra.mxu0 %v1293
        %1303 = vmatpush.bf16.msra.mxu0 %v1292
        %1304 = vmatpush.bf16.msra.mxu0 %v1291
        %1305 = vmatpush.bf16.msra.mxu0 %v1290
        %1306 = vmatpush.bf16.msra.mxu0 %v1289
        %1307 = vmatpush.bf16.msra.mxu0 %v1288
        %1308 = vmatpush.bf16.msra.mxu0 %v1287
        %1309 = vmatpush.bf16.msra.mxu0 %v1286
        %1310 = vmatmul.bf16.gmra.mxu0 %v1253
        %v1311 = vpop.f32.mrf.mxu0
        %v1312 = vadd.f32 0.0, %v1311
        %v1313 = vpop.f32.mrf.mxu0
        %1314 = vdwg.mxu0
        %v1315 = vadd.f32 %v1146, %v1312
        %v1316 = vld [vmem:[%s640] sm:$0x1]
        %v1318 = vperm.slane %v1316, 0
        %v1320 = vadd.f32 %v1315, %v1318
        %1321 = vst.msk [vmem:[#allocation2] sm:$0xff] %vm688, %v1320
        %p1322 = scmp.eq.s32.totalorder %s33, 1
        // Predicated region
        $region111: #{tpu_custom_call.1} parent=71 // pred_check
          %p1323 = pneg %p1322
        $region112: #{tpu_custom_call.1} parent=71 // pred_check_branch
          %1325 = sbr.rel (%p1323) target = $region114
        $region113: #{tpu_custom_call.1} parent=71 // pred_region
          %1326 = vst.msk [vmem:[%s592] sm:$0xff] %vm688, %v1320
        $region114: #{tpu_custom_call.1} parent=71 // pred_fallthru
          _
        %s1327 = sand.u32 %s386, 1
        %s1328 = scalar_lea.sflag [#allocation5], %s1327
        %s1329 = sand.u32 %s386, 1
        %s1330 = smul.addr %s1329, 8
        %s1331 = scalar_lea.vmem [#allocation4], %s1330
        // Predicated region
        $region115: #{tpu_custom_call.1} parent=71 // pred_check
          %p1332 = pneg %p396
        $region116: #{tpu_custom_call.1} parent=71 // pred_check_branch
          %1334 = sbr.rel (%p1332) target = $region118
        $region117: #{tpu_custom_call.1} parent=71 // pred_region
          %1336 = vsyncadd %s1328, 0
          %s1337 = smul.addr %s32, 8
          %s1338 = scalar_lea.hbm %s14, %s1337
          %s1340 = sshll.u32 %s1331, 4
          %s1341 = int_to_ptr.vmem [resolvable:$true] %s1340
          %s1342 = sshll.u32 %s1338, 4
          %s1343 = int_to_ptr.hbm [resolvable:$true] %s1342
          %1345 = dma.vmem_to_hbm [thread:$0]  %s1341, 128, %s1343, %s1328
        $region118: #{tpu_custom_call.1} parent=71 // pred_fallthru
          _
      $region72: #{tpu_custom_call.1} parent=5 // pred_fallthru
        _
      %p1346 = scmp.le.s32.totalorder 2, %s23
      // Predicated region
      $region119: #{tpu_custom_call.1} parent=5 // pred_check
        %p1347 = pneg %p1346
      $region120: #{tpu_custom_call.1} parent=5 // pred_check_branch
        %1349 = sbr.rel (%p1347) target = $region122
      $region121: #{tpu_custom_call.1} parent=5 // pred_region
        %s1350 = ssub.s32 %s23, 2
        // Predicated region
        $region123: #{tpu_custom_call.1} parent=121 // pred_check
          %p1351 = pneg %p402
        $region124: #{tpu_custom_call.1} parent=121 // pred_check_branch
          %1353 = sbr.rel (%p1351) target = $region126
        $region125: #{tpu_custom_call.1} parent=121 // pred_region
          %s1354 = sand.u32 %s387, 1
          %s1355 = scalar_lea.sflag [#allocation5], %s1354
          %s1356 = sand.u32 %s387, 1
          %s1357 = smul.addr %s1356, 8
          %s1358 = scalar_lea.vmem [#allocation4], %s1357
          %1360 = dma.done %s1355, 128
        $region126: #{tpu_custom_call.1} parent=121 // pred_fallthru
          _
      $region122: #{tpu_custom_call.1} parent=5 // pred_fallthru
        _
    $region6: #{tpu_custom_call.1} parent=1 // loop_footer
      %s27 = sadd.s32 1, %s23
    $region7: #{tpu_custom_call.1} parent=1 // loop_footer_branch
      %22 = sbr.rel target = $region3
    $region8: #{tpu_custom_call.1} parent=1 // loop_exit
      _
    %1361 = vsyncpa [#allocation5], 1
    %s1362 = scalar_lea.sflag [#allocation5], 1
    %1363 = vsyncpa %s1362, 1
  %1364 = vsyncmov [#allocation3]
  %s1365 = vpop.sfrf %1364
  %p1366 = scmp.eq.s32.totalorder %s1365, 0
  %p1367 = pneg %p1366
  %1369 = shalt.err (%p1367)

</llo_original>
